<compile_context>
chip_gen: v7x
topology: tpu7x:2x2x1
jax: 0.10.0
libtpu: 0.0.40
codegen_flags: <defaults>
</compile_context>

<pallas_src>
import jax
import jax.numpy as jnp
from jax import lax
from jax.experimental import pallas as pl
from jax.experimental.pallas import tpu as pltpu


# ----------------------------------------------------------------------------
# Kernel
# ----------------------------------------------------------------------------
def _septurn_fused_kernel(x1_ref, x2_ref, x3_ref,
                          wih1_ref, wih2_ref, wih3_ref,
                          whh_ref, bg_ref, wlin_ref, blin_ref,
                          out_ref, gx_ref):
    T = x1_ref.shape[0]
    HP = whh_ref.shape[0]            # 128-aligned per-gate stride (3H padded)

    # Hoisted input projection + gate bias for ALL timesteps: (T, 4*HP).
    # Folded concat: sum of three small dots (non-critical path).
    gx = jnp.dot(x1_ref[...].astype(jnp.bfloat16), wih1_ref[...],
                 preferred_element_type=jnp.float32)
    gx = gx + jnp.dot(x2_ref[...].astype(jnp.bfloat16), wih2_ref[...],
                      preferred_element_type=jnp.float32)
    gx = gx + jnp.dot(x3_ref[...].astype(jnp.bfloat16), wih3_ref[...],
                      preferred_element_type=jnp.float32)
    # Stage in VMEM scratch: per-step row reads are single aligned loads and
    # gx stays out of the vreg live set during the unrolled recurrence.
    gx_ref[...] = gx + bg_ref[...]

    h0 = jnp.zeros((1, HP), jnp.float32)
    c0 = jnp.zeros((1, HP), jnp.float32)

    def step(t, carry):
        h, c = carry
        # Recurrent weights are read inside the dot (not hoisted across the
        # unrolled loop); bf16 operands, f32 accumulation.
        gates = gx_ref[pl.ds(t, 1), :] + jnp.dot(
            h.astype(jnp.bfloat16), whh_ref[...],
            preferred_element_type=jnp.float32)
        # Packed gate order (i, f, o, g): one sigmoid covers the three
        # sigmoid gates, one tanh covers g.  All slices are 128-lane aligned.
        sig = jax.nn.sigmoid(gates[:, 0:3 * HP])
        i_g = sig[:, 0:HP]
        f_g = sig[:, HP:2 * HP]
        o_g = sig[:, 2 * HP:3 * HP]
        g_g = jnp.tanh(gates[:, 3 * HP:4 * HP])
        c_new = f_g * c + i_g * g_g
        h_new = o_g * jnp.tanh(c_new)
        return (h_new, c_new)

    if T <= 16:
        # Full unroll: h/c live in registers, scheduler interleaves steps.
        h, c = h0, c0
        for t in range(T):
            h, c = step(t, (h, c))
    else:
        # Guard against vreg blow-out at larger T.
        h, c = lax.fori_loop(0, T, step, (h0, c0))

    # Fused final Linear: (1, HP) @ (HP, nOut) + (1, nOut), single write.
    out_ref[...] = (jnp.dot(h, wlin_ref[...],
                            preferred_element_type=jnp.float32)
                    + blin_ref[...])


# ----------------------------------------------------------------------------
# Wrapper
# ----------------------------------------------------------------------------
@jax.jit
def septurn_rnn_forward(x1, x2, x3, packed):
    """x1, x2, x3: (T, 1, nIn) float32.  Returns (1, nOut) float32."""
    T, B, nIn = x1.shape
    assert B == 1, "SepTurn_RNN.forward's view(1, -1) implies batch == 1"
    nOut = packed["b_lin"].shape[1]
    HP = packed["w_hh_bd"].shape[0]

    # Drop the batch=1 axis; layout-preserving reshape (no data movement).
    x1f = x1.reshape(T, nIn)
    x2f = x2.reshape(T, nIn)
    x3f = x3.reshape(T, nIn)

    vmem = pl.BlockSpec(memory_space=pltpu.MemorySpace.VMEM)
    return pl.pallas_call(
        _septurn_fused_kernel,
        out_shape=jax.ShapeDtypeStruct((1, nOut), jnp.float32),
        in_specs=[vmem] * 10,
        out_specs=vmem,
        scratch_shapes=[pltpu.VMEM((T, 4 * HP), jnp.float32)],
    )(x1f, x2f, x3f,
      packed["w_ih1"], packed["w_ih2"], packed["w_ih3"],
      packed["w_hh_bd"], packed["b_bd"], packed["w_lin"], packed["b_lin"])


# ----------------------------------------------------------------------------
# Parameters: PyTorch-layout raw params + packing into the fused kernel layout
# ----------------------------------------------------------------------------
def init_params(key, nIn, nHidden, nOut):
    """Deterministic synthetic parameters, PyTorch-style uniform init,
    stored in PyTorch layout (gate row order i, f, g, o)."""
    ks = jax.random.split(key, 14)
    bound = 1.0 / (nHidden ** 0.5)

    def u(k, shape, b):
        return jax.random.uniform(k, shape, jnp.float32, -b, b)

    w_ih, w_hh, b_ih, b_hh = [], [], [], []
    for r in range(3):
        w_ih.append(u(ks[4 * r + 0], (4 * nHidden, nIn), bound))
        w_hh.append(u(ks[4 * r + 1], (4 * nHidden, nHidden), bound))
        b_ih.append(u(ks[4 * r + 2], (4 * nHidden,), bound))
        b_hh.append(u(ks[4 * r + 3], (4 * nHidden,), bound))

    lin_bound = 1.0 / ((3 * nHidden) ** 0.5)
    w_lin = u(ks[12], (nOut, 3 * nHidden), lin_bound)
    b_lin = u(ks[13], (nOut,), lin_bound)

    return {
        "w_ih": jnp.stack(w_ih), "w_hh": jnp.stack(w_hh),
        "b_ih": jnp.stack(b_ih), "b_hh": jnp.stack(b_hh),
        "w_lin": w_lin, "b_lin": b_lin,
    }


def pack_params(raw, nIn, nHidden, nOut):
    """Pack the three LSTMs block-diagonally with kernel gate order
    (i, f, o, g) and a 128-lane per-gate stride HP >= 3*nHidden:
    columns [g*HP + r*H : g*HP + (r+1)*H] hold gate g of RNN r; all padded
    columns/rows/bias lanes are exactly zero (keeps padded h/c lanes at 0)."""
    H = nHidden
    H3 = 3 * H
    HP = max(128, ((H3 + 127) // 128) * 128)   # 128-aligned gate stride
    # kernel gate index -> PyTorch gate chunk (PyTorch order is i, f, g, o)
    torch_gate_for_kernel_gate = (0, 1, 3, 2)

    wih = [jnp.zeros((nIn, 4 * HP), jnp.float32) for _ in range(3)]
    w_hh_bd = jnp.zeros((HP, 4 * HP), jnp.float32)
    b_bd = jnp.zeros((1, 4 * HP), jnp.float32)

    for r in range(3):
        wih_t = raw["w_ih"][r].T                    # (nIn, 4H)
        whh_t = raw["w_hh"][r].T                    # (H, 4H)
        bsum = raw["b_ih"][r] + raw["b_hh"][r]      # (4H,)
        for gk, gt in enumerate(torch_gate_for_kernel_gate):
            col = gk * HP + r * H
            wih[r] = wih[r].at[:, col:col + H].set(
                wih_t[:, gt * H:(gt + 1) * H])
            w_hh_bd = w_hh_bd.at[r * H:(r + 1) * H, col:col + H].set(
                whh_t[:, gt * H:(gt + 1) * H])
            b_bd = b_bd.at[0, col:col + H].set(bsum[gt * H:(gt + 1) * H])

    # Final Linear: rows 0:3H follow the (h1, h2, h3) concat order; padded
    # rows (zero h lanes) are zero.
    w_lin = jnp.zeros((HP, nOut), jnp.float32).at[:H3, :].set(raw["w_lin"].T)

    return {
        # MXU operands stored bf16 (f32 accumulation in-kernel).
        "w_ih1": wih[0].astype(jnp.bfloat16),        # (nIn, 4*HP)
        "w_ih2": wih[1].astype(jnp.bfloat16),
        "w_ih3": wih[2].astype(jnp.bfloat16),
        "w_hh_bd": w_hh_bd.astype(jnp.bfloat16),     # (HP,  4*HP)
        # Bias / final linear stay f32 (VPU/EUP path, and final accuracy).
        "b_bd": b_bd,                                # (1,   4*HP)
        "w_lin": w_lin,                              # (HP, nOut)
        "b_lin": raw["b_lin"][None, :],              # (1,  nOut)
    }


# ----------------------------------------------------------------------------
# Pure-JAX reference matching PyTorch LSTM + Linear semantics (raw layout)
# ----------------------------------------------------------------------------
def _reference_forward(x1, x2, x3, raw):
    def lstm_final_h(x, w_ih, w_hh, b_ih, b_hh):
        H = w_hh.shape[1]
        wih_t, whh_t = w_ih.T, w_hh.T
        b = (b_ih + b_hh)[None, :]

        def step(carry, x_t):
            h, c = carry
            g = x_t[None, :] @ wih_t + h @ whh_t + b
            i_g = jax.nn.sigmoid(g[:, 0 * H:1 * H])
            f_g = jax.nn.sigmoid(g[:, 1 * H:2 * H])
            g_g = jnp.tanh(g[:, 2 * H:3 * H])
            o_g = jax.nn.sigmoid(g[:, 3 * H:4 * H])
            c_new = f_g * c + i_g * g_g
            h_new = o_g * jnp.tanh(c_new)
            return (h_new, c_new), None

        h0 = jnp.zeros((1, H), jnp.float32)
        (h, _), _ = lax.scan(step, (h0, h0), x)
        return h

    hs = [lstm_final_h(x[:, 0, :], raw["w_ih"][r], raw["w_hh"][r],
                       raw["b_ih"][r], raw["b_hh"][r])
          for r, x in enumerate([x1, x2, x3])]
    inp = jnp.concatenate(hs, axis=1)                       # (1, 3H)
    return inp @ raw["w_lin"].T + raw["b_lin"][None, :]     # (1, nOut)


if __name__ == "__main__":
    T, nIn, nHidden, nOut = 8, 32, 32, 16

    key = jax.random.PRNGKey(0)
    k_p, k1, k2, k3 = jax.random.split(key, 4)
    raw = init_params(k_p, nIn, nHidden, nOut)
    packed = pack_params(raw, nIn, nHidden, nOut)

    x1 = jax.random.normal(k1, (T, 1, nIn), jnp.float32)
    x2 = jax.random.normal(k2, (T, 1, nIn), jnp.float32)
    x3 = jax.random.normal(k3, (T, 1, nIn), jnp.float32)

    out = jax.block_until_ready(septurn_rnn_forward(x1, x2, x3, packed))
    ref = _reference_forward(x1, x2, x3, raw)

    assert out.shape == (1, nOut)
    assert jnp.allclose(out, ref, atol=2e-3, rtol=2e-3), (out, ref)
    print("KERNEL_OK")
</pallas_src>

<mosaic_0001>
module attributes {stable_mosaic.version = 11 : i64} {
  func.func @_septurn_fused_kernel(%arg0: memref<8x32xf32, #tpu.memory_space<vmem>>, %arg1: memref<8x32xf32, #tpu.memory_space<vmem>>, %arg2: memref<8x32xf32, #tpu.memory_space<vmem>>, %arg3: memref<32x512xbf16, #tpu.memory_space<vmem>>, %arg4: memref<32x512xbf16, #tpu.memory_space<vmem>>, %arg5: memref<32x512xbf16, #tpu.memory_space<vmem>>, %arg6: memref<128x512xbf16, #tpu.memory_space<vmem>>, %arg7: memref<1x512xf32, #tpu.memory_space<vmem>>, %arg8: memref<128x16xf32, #tpu.memory_space<vmem>>, %arg9: memref<1x16xf32, #tpu.memory_space<vmem>>, %arg10: memref<1x16xf32, #tpu.memory_space<vmem>>, %arg11: memref<8x512xf32, #tpu.memory_space<vmem>>) attributes {dimension_semantics = [], scalar_prefetch = 0 : i64, scratch_operands = 1 : i64, tpu.core_type = #tpu.core_type<tc>} {
    %c0 = arith.constant 0 : index
    %c0_0 = arith.constant 0 : index
    %0 = vector.load %arg0[%c0, %c0_0] : memref<8x32xf32, #tpu.memory_space<vmem>>, vector<8x32xf32>
    %1 = arith.truncf %0 : vector<8x32xf32> to vector<8x32xbf16>
    %c0_1 = arith.constant 0 : index
    %c0_2 = arith.constant 0 : index
    %2 = vector.load %arg3[%c0_1, %c0_2] : memref<32x512xbf16, #tpu.memory_space<vmem>>, vector<32x512xbf16>
    %cst = arith.constant dense<0.000000e+00> : vector<8x512xf32>
    %3 = tpu.matmul %1, %2, %cst {dimension_numbers = #tpu.dot_dimension_numbers<[1], [0], [0], [1], [0, 0, 1, 1], [], []>} : vector<8x32xbf16>, vector<32x512xbf16>, vector<8x512xf32> -> vector<8x512xf32>
    %c0_3 = arith.constant 0 : index
    %c0_4 = arith.constant 0 : index
    %4 = vector.load %arg1[%c0_3, %c0_4] : memref<8x32xf32, #tpu.memory_space<vmem>>, vector<8x32xf32>
    %5 = arith.truncf %4 : vector<8x32xf32> to vector<8x32xbf16>
    %c0_5 = arith.constant 0 : index
    %c0_6 = arith.constant 0 : index
    %6 = vector.load %arg4[%c0_5, %c0_6] : memref<32x512xbf16, #tpu.memory_space<vmem>>, vector<32x512xbf16>
    %cst_7 = arith.constant dense<0.000000e+00> : vector<8x512xf32>
    %7 = tpu.matmul %5, %6, %cst_7 {dimension_numbers = #tpu.dot_dimension_numbers<[1], [0], [0], [1], [0, 0, 1, 1], [], []>} : vector<8x32xbf16>, vector<32x512xbf16>, vector<8x512xf32> -> vector<8x512xf32>
    %8 = arith.addf %3, %7 : vector<8x512xf32>
    %c0_8 = arith.constant 0 : index
    %c0_9 = arith.constant 0 : index
    %9 = vector.load %arg2[%c0_8, %c0_9] : memref<8x32xf32, #tpu.memory_space<vmem>>, vector<8x32xf32>
    %10 = arith.truncf %9 : vector<8x32xf32> to vector<8x32xbf16>
    %c0_10 = arith.constant 0 : index
    %c0_11 = arith.constant 0 : index
    %11 = vector.load %arg5[%c0_10, %c0_11] : memref<32x512xbf16, #tpu.memory_space<vmem>>, vector<32x512xbf16>
    %cst_12 = arith.constant dense<0.000000e+00> : vector<8x512xf32>
    %12 = tpu.matmul %10, %11, %cst_12 {dimension_numbers = #tpu.dot_dimension_numbers<[1], [0], [0], [1], [0, 0, 1, 1], [], []>} : vector<8x32xbf16>, vector<32x512xbf16>, vector<8x512xf32> -> vector<8x512xf32>
    %13 = arith.addf %8, %12 : vector<8x512xf32>
    %c0_13 = arith.constant 0 : index
    %c0_14 = arith.constant 0 : index
    %14 = vector.load %arg7[%c0_13, %c0_14] : memref<1x512xf32, #tpu.memory_space<vmem>>, vector<1x512xf32>
    %15 = vector.broadcast %14 : vector<1x512xf32> to vector<8x512xf32>
    %16 = arith.addf %13, %15 : vector<8x512xf32>
    %c0_15 = arith.constant 0 : index
    %c0_16 = arith.constant 0 : index
    %17 = vector.load %arg11[%c0_15, %c0_16] : memref<8x512xf32, #tpu.memory_space<vmem>>, vector<8x512xf32>
    tpu.vector_store %arg11[%c0_15, %c0_16], %16 {strides = array<i32>} : memref<8x512xf32, #tpu.memory_space<vmem>>, vector<8x512xf32>,
    %cst_17 = arith.constant 0.000000e+00 : f32
    %18 = vector.broadcast %cst_17 : f32 to vector<1x128xf32>
    %cst_18 = arith.constant 0.000000e+00 : f32
    %19 = vector.broadcast %cst_18 : f32 to vector<1x128xf32>
    %c0_19 = arith.constant 0 : index
    %c0_20 = arith.constant 0 : index
    %20 = vector.load %arg11[%c0_19, %c0_20] : memref<8x512xf32, #tpu.memory_space<vmem>>, vector<1x512xf32>
    %21 = arith.truncf %18 : vector<1x128xf32> to vector<1x128xbf16>
    %c0_21 = arith.constant 0 : index
    %c0_22 = arith.constant 0 : index
    %22 = vector.load %arg6[%c0_21, %c0_22] : memref<128x512xbf16, #tpu.memory_space<vmem>>, vector<128x512xbf16>
    %cst_23 = arith.constant dense<0.000000e+00> : vector<1x512xf32>
    %23 = tpu.matmul %21, %22, %cst_23 {dimension_numbers = #tpu.dot_dimension_numbers<[1], [0], [0], [1], [0, 0, 1, 1], [], []>} : vector<1x128xbf16>, vector<128x512xbf16>, vector<1x512xf32> -> vector<1x512xf32>
    %24 = arith.addf %20, %23 : vector<1x512xf32>
    %25 = vector.extract_strided_slice %24 {offsets = [0, 0], sizes = [1, 384], strides = [1, 1]} : vector<1x512xf32> to vector<1x384xf32>
    %26 = arith.negf %25 : vector<1x384xf32>
    %27 = math.exp %26 : vector<1x384xf32>
    %cst_24 = arith.constant 1.000000e+00 : f32
    %28 = vector.broadcast %cst_24 : f32 to vector<1x384xf32>
    %29 = arith.addf %28, %27 : vector<1x384xf32>
    %30 = arith.divf %28, %29 : vector<1x384xf32>
    %31 = vector.extract_strided_slice %30 {offsets = [0, 0], sizes = [1, 128], strides = [1, 1]} : vector<1x384xf32> to vector<1x128xf32>
    %32 = vector.extract_strided_slice %30 {offsets = [0, 128], sizes = [1, 128], strides = [1, 1]} : vector<1x384xf32> to vector<1x128xf32>
    %33 = vector.extract_strided_slice %30 {offsets = [0, 256], sizes = [1, 128], strides = [1, 1]} : vector<1x384xf32> to vector<1x128xf32>
    %34 = vector.extract_strided_slice %24 {offsets = [0, 384], sizes = [1, 128], strides = [1, 1]} : vector<1x512xf32> to vector<1x128xf32>
    %35 = math.tanh %34 : vector<1x128xf32>
    %36 = arith.mulf %32, %19 : vector<1x128xf32>
    %37 = arith.mulf %31, %35 : vector<1x128xf32>
    %38 = arith.addf %36, %37 : vector<1x128xf32>
    %39 = math.tanh %38 : vector<1x128xf32>
    %40 = arith.mulf %33, %39 : vector<1x128xf32>
    %c1 = arith.constant 1 : index
    %c0_25 = arith.constant 0 : index
    %41 = vector.load %arg11[%c1, %c0_25] : memref<8x512xf32, #tpu.memory_space<vmem>>, vector<1x512xf32>
    %42 = arith.truncf %40 : vector<1x128xf32> to vector<1x128xbf16>
    %c0_26 = arith.constant 0 : index
    %c0_27 = arith.constant 0 : index
    %43 = vector.load %arg6[%c0_26, %c0_27] : memref<128x512xbf16, #tpu.memory_space<vmem>>, vector<128x512xbf16>
    %cst_28 = arith.constant dense<0.000000e+00> : vector<1x512xf32>
    %44 = tpu.matmul %42, %43, %cst_28 {dimension_numbers = #tpu.dot_dimension_numbers<[1], [0], [0], [1], [0, 0, 1, 1], [], []>} : vector<1x128xbf16>, vector<128x512xbf16>, vector<1x512xf32> -> vector<1x512xf32>
    %45 = arith.addf %41, %44 : vector<1x512xf32>
    %46 = vector.extract_strided_slice %45 {offsets = [0, 0], sizes = [1, 384], strides = [1, 1]} : vector<1x512xf32> to vector<1x384xf32>
    %47 = arith.negf %46 : vector<1x384xf32>
    %48 = math.exp %47 : vector<1x384xf32>
    %cst_29 = arith.constant 1.000000e+00 : f32
    %49 = vector.broadcast %cst_29 : f32 to vector<1x384xf32>
    %50 = arith.addf %49, %48 : vector<1x384xf32>
    %51 = arith.divf %49, %50 : vector<1x384xf32>
    %52 = vector.extract_strided_slice %51 {offsets = [0, 0], sizes = [1, 128], strides = [1, 1]} : vector<1x384xf32> to vector<1x128xf32>
    %53 = vector.extract_strided_slice %51 {offsets = [0, 128], sizes = [1, 128], strides = [1, 1]} : vector<1x384xf32> to vector<1x128xf32>
    %54 = vector.extract_strided_slice %51 {offsets = [0, 256], sizes = [1, 128], strides = [1, 1]} : vector<1x384xf32> to vector<1x128xf32>
    %55 = vector.extract_strided_slice %45 {offsets = [0, 384], sizes = [1, 128], strides = [1, 1]} : vector<1x512xf32> to vector<1x128xf32>
    %56 = math.tanh %55 : vector<1x128xf32>
    %57 = arith.mulf %53, %38 : vector<1x128xf32>
    %58 = arith.mulf %52, %56 : vector<1x128xf32>
    %59 = arith.addf %57, %58 : vector<1x128xf32>
    %60 = math.tanh %59 : vector<1x128xf32>
    %61 = arith.mulf %54, %60 : vector<1x128xf32>
    %c2 = arith.constant 2 : index
    %c0_30 = arith.constant 0 : index
    %62 = vector.load %arg11[%c2, %c0_30] : memref<8x512xf32, #tpu.memory_space<vmem>>, vector<1x512xf32>
    %63 = arith.truncf %61 : vector<1x128xf32> to vector<1x128xbf16>
    %c0_31 = arith.constant 0 : index
    %c0_32 = arith.constant 0 : index
    %64 = vector.load %arg6[%c0_31, %c0_32] : memref<128x512xbf16, #tpu.memory_space<vmem>>, vector<128x512xbf16>
    %cst_33 = arith.constant dense<0.000000e+00> : vector<1x512xf32>
    %65 = tpu.matmul %63, %64, %cst_33 {dimension_numbers = #tpu.dot_dimension_numbers<[1], [0], [0], [1], [0, 0, 1, 1], [], []>} : vector<1x128xbf16>, vector<128x512xbf16>, vector<1x512xf32> -> vector<1x512xf32>
    %66 = arith.addf %62, %65 : vector<1x512xf32>
    %67 = vector.extract_strided_slice %66 {offsets = [0, 0], sizes = [1, 384], strides = [1, 1]} : vector<1x512xf32> to vector<1x384xf32>
    %68 = arith.negf %67 : vector<1x384xf32>
    %69 = math.exp %68 : vector<1x384xf32>
    %cst_34 = arith.constant 1.000000e+00 : f32
    %70 = vector.broadcast %cst_34 : f32 to vector<1x384xf32>
    %71 = arith.addf %70, %69 : vector<1x384xf32>
    %72 = arith.divf %70, %71 : vector<1x384xf32>
    %73 = vector.extract_strided_slice %72 {offsets = [0, 0], sizes = [1, 128], strides = [1, 1]} : vector<1x384xf32> to vector<1x128xf32>
    %74 = vector.extract_strided_slice %72 {offsets = [0, 128], sizes = [1, 128], strides = [1, 1]} : vector<1x384xf32> to vector<1x128xf32>
    %75 = vector.extract_strided_slice %72 {offsets = [0, 256], sizes = [1, 128], strides = [1, 1]} : vector<1x384xf32> to vector<1x128xf32>
    %76 = vector.extract_strided_slice %66 {offsets = [0, 384], sizes = [1, 128], strides = [1, 1]} : vector<1x512xf32> to vector<1x128xf32>
    %77 = math.tanh %76 : vector<1x128xf32>
    %78 = arith.mulf %74, %59 : vector<1x128xf32>
    %79 = arith.mulf %73, %77 : vector<1x128xf32>
    %80 = arith.addf %78, %79 : vector<1x128xf32>
    %81 = math.tanh %80 : vector<1x128xf32>
    %82 = arith.mulf %75, %81 : vector<1x128xf32>
    %c3 = arith.constant 3 : index
    %c0_35 = arith.constant 0 : index
    %83 = vector.load %arg11[%c3, %c0_35] : memref<8x512xf32, #tpu.memory_space<vmem>>, vector<1x512xf32>
    %84 = arith.truncf %82 : vector<1x128xf32> to vector<1x128xbf16>
    %c0_36 = arith.constant 0 : index
    %c0_37 = arith.constant 0 : index
    %85 = vector.load %arg6[%c0_36, %c0_37] : memref<128x512xbf16, #tpu.memory_space<vmem>>, vector<128x512xbf16>
    %cst_38 = arith.constant dense<0.000000e+00> : vector<1x512xf32>
    %86 = tpu.matmul %84, %85, %cst_38 {dimension_numbers = #tpu.dot_dimension_numbers<[1], [0], [0], [1], [0, 0, 1, 1], [], []>} : vector<1x128xbf16>, vector<128x512xbf16>, vector<1x512xf32> -> vector<1x512xf32>
    %87 = arith.addf %83, %86 : vector<1x512xf32>
    %88 = vector.extract_strided_slice %87 {offsets = [0, 0], sizes = [1, 384], strides = [1, 1]} : vector<1x512xf32> to vector<1x384xf32>
    %89 = arith.negf %88 : vector<1x384xf32>
    %90 = math.exp %89 : vector<1x384xf32>
    %cst_39 = arith.constant 1.000000e+00 : f32
    %91 = vector.broadcast %cst_39 : f32 to vector<1x384xf32>
    %92 = arith.addf %91, %90 : vector<1x384xf32>
    %93 = arith.divf %91, %92 : vector<1x384xf32>
    %94 = vector.extract_strided_slice %93 {offsets = [0, 0], sizes = [1, 128], strides = [1, 1]} : vector<1x384xf32> to vector<1x128xf32>
    %95 = vector.extract_strided_slice %93 {offsets = [0, 128], sizes = [1, 128], strides = [1, 1]} : vector<1x384xf32> to vector<1x128xf32>
    %96 = vector.extract_strided_slice %93 {offsets = [0, 256], sizes = [1, 128], strides = [1, 1]} : vector<1x384xf32> to vector<1x128xf32>
    %97 = vector.extract_strided_slice %87 {offsets = [0, 384], sizes = [1, 128], strides = [1, 1]} : vector<1x512xf32> to vector<1x128xf32>
    %98 = math.tanh %97 : vector<1x128xf32>
    %99 = arith.mulf %95, %80 : vector<1x128xf32>
    %100 = arith.mulf %94, %98 : vector<1x128xf32>
    %101 = arith.addf %99, %100 : vector<1x128xf32>
    %102 = math.tanh %101 : vector<1x128xf32>
    %103 = arith.mulf %96, %102 : vector<1x128xf32>
    %c4 = arith.constant 4 : index
    %c0_40 = arith.constant 0 : index
    %104 = vector.load %arg11[%c4, %c0_40] : memref<8x512xf32, #tpu.memory_space<vmem>>, vector<1x512xf32>
    %105 = arith.truncf %103 : vector<1x128xf32> to vector<1x128xbf16>
    %c0_41 = arith.constant 0 : index
    %c0_42 = arith.constant 0 : index
    %106 = vector.load %arg6[%c0_41, %c0_42] : memref<128x512xbf16, #tpu.memory_space<vmem>>, vector<128x512xbf16>
    %cst_43 = arith.constant dense<0.000000e+00> : vector<1x512xf32>
    %107 = tpu.matmul %105, %106, %cst_43 {dimension_numbers = #tpu.dot_dimension_numbers<[1], [0], [0], [1], [0, 0, 1, 1], [], []>} : vector<1x128xbf16>, vector<128x512xbf16>, vector<1x512xf32> -> vector<1x512xf32>
    %108 = arith.addf %104, %107 : vector<1x512xf32>
    %109 = vector.extract_strided_slice %108 {offsets = [0, 0], sizes = [1, 384], strides = [1, 1]} : vector<1x512xf32> to vector<1x384xf32>
    %110 = arith.negf %109 : vector<1x384xf32>
    %111 = math.exp %110 : vector<1x384xf32>
    %cst_44 = arith.constant 1.000000e+00 : f32
    %112 = vector.broadcast %cst_44 : f32 to vector<1x384xf32>
    %113 = arith.addf %112, %111 : vector<1x384xf32>
    %114 = arith.divf %112, %113 : vector<1x384xf32>
    %115 = vector.extract_strided_slice %114 {offsets = [0, 0], sizes = [1, 128], strides = [1, 1]} : vector<1x384xf32> to vector<1x128xf32>
    %116 = vector.extract_strided_slice %114 {offsets = [0, 128], sizes = [1, 128], strides = [1, 1]} : vector<1x384xf32> to vector<1x128xf32>
    %117 = vector.extract_strided_slice %114 {offsets = [0, 256], sizes = [1, 128], strides = [1, 1]} : vector<1x384xf32> to vector<1x128xf32>
    %118 = vector.extract_strided_slice %108 {offsets = [0, 384], sizes = [1, 128], strides = [1, 1]} : vector<1x512xf32> to vector<1x128xf32>
    %119 = math.tanh %118 : vector<1x128xf32>
    %120 = arith.mulf %116, %101 : vector<1x128xf32>
    %121 = arith.mulf %115, %119 : vector<1x128xf32>
    %122 = arith.addf %120, %121 : vector<1x128xf32>
    %123 = math.tanh %122 : vector<1x128xf32>
    %124 = arith.mulf %117, %123 : vector<1x128xf32>
    %c5 = arith.constant 5 : index
    %c0_45 = arith.constant 0 : index
    %125 = vector.load %arg11[%c5, %c0_45] : memref<8x512xf32, #tpu.memory_space<vmem>>, vector<1x512xf32>
    %126 = arith.truncf %124 : vector<1x128xf32> to vector<1x128xbf16>
    %c0_46 = arith.constant 0 : index
    %c0_47 = arith.constant 0 : index
    %127 = vector.load %arg6[%c0_46, %c0_47] : memref<128x512xbf16, #tpu.memory_space<vmem>>, vector<128x512xbf16>
    %cst_48 = arith.constant dense<0.000000e+00> : vector<1x512xf32>
    %128 = tpu.matmul %126, %127, %cst_48 {dimension_numbers = #tpu.dot_dimension_numbers<[1], [0], [0], [1], [0, 0, 1, 1], [], []>} : vector<1x128xbf16>, vector<128x512xbf16>, vector<1x512xf32> -> vector<1x512xf32>
    %129 = arith.addf %125, %128 : vector<1x512xf32>
    %130 = vector.extract_strided_slice %129 {offsets = [0, 0], sizes = [1, 384], strides = [1, 1]} : vector<1x512xf32> to vector<1x384xf32>
    %131 = arith.negf %130 : vector<1x384xf32>
    %132 = math.exp %131 : vector<1x384xf32>
    %cst_49 = arith.constant 1.000000e+00 : f32
    %133 = vector.broadcast %cst_49 : f32 to vector<1x384xf32>
    %134 = arith.addf %133, %132 : vector<1x384xf32>
    %135 = arith.divf %133, %134 : vector<1x384xf32>
    %136 = vector.extract_strided_slice %135 {offsets = [0, 0], sizes = [1, 128], strides = [1, 1]} : vector<1x384xf32> to vector<1x128xf32>
    %137 = vector.extract_strided_slice %135 {offsets = [0, 128], sizes = [1, 128], strides = [1, 1]} : vector<1x384xf32> to vector<1x128xf32>
    %138 = vector.extract_strided_slice %135 {offsets = [0, 256], sizes = [1, 128], strides = [1, 1]} : vector<1x384xf32> to vector<1x128xf32>
    %139 = vector.extract_strided_slice %129 {offsets = [0, 384], sizes = [1, 128], strides = [1, 1]} : vector<1x512xf32> to vector<1x128xf32>
    %140 = math.tanh %139 : vector<1x128xf32>
    %141 = arith.mulf %137, %122 : vector<1x128xf32>
    %142 = arith.mulf %136, %140 : vector<1x128xf32>
    %143 = arith.addf %141, %142 : vector<1x128xf32>
    %144 = math.tanh %143 : vector<1x128xf32>
    %145 = arith.mulf %138, %144 : vector<1x128xf32>
    %c6 = arith.constant 6 : index
    %c0_50 = arith.constant 0 : index
    %146 = vector.load %arg11[%c6, %c0_50] : memref<8x512xf32, #tpu.memory_space<vmem>>, vector<1x512xf32>
    %147 = arith.truncf %145 : vector<1x128xf32> to vector<1x128xbf16>
    %c0_51 = arith.constant 0 : index
    %c0_52 = arith.constant 0 : index
    %148 = vector.load %arg6[%c0_51, %c0_52] : memref<128x512xbf16, #tpu.memory_space<vmem>>, vector<128x512xbf16>
    %cst_53 = arith.constant dense<0.000000e+00> : vector<1x512xf32>
    %149 = tpu.matmul %147, %148, %cst_53 {dimension_numbers = #tpu.dot_dimension_numbers<[1], [0], [0], [1], [0, 0, 1, 1], [], []>} : vector<1x128xbf16>, vector<128x512xbf16>, vector<1x512xf32> -> vector<1x512xf32>
    %150 = arith.addf %146, %149 : vector<1x512xf32>
    %151 = vector.extract_strided_slice %150 {offsets = [0, 0], sizes = [1, 384], strides = [1, 1]} : vector<1x512xf32> to vector<1x384xf32>
    %152 = arith.negf %151 : vector<1x384xf32>
    %153 = math.exp %152 : vector<1x384xf32>
    %cst_54 = arith.constant 1.000000e+00 : f32
    %154 = vector.broadcast %cst_54 : f32 to vector<1x384xf32>
    %155 = arith.addf %154, %153 : vector<1x384xf32>
    %156 = arith.divf %154, %155 : vector<1x384xf32>
    %157 = vector.extract_strided_slice %156 {offsets = [0, 0], sizes = [1, 128], strides = [1, 1]} : vector<1x384xf32> to vector<1x128xf32>
    %158 = vector.extract_strided_slice %156 {offsets = [0, 128], sizes = [1, 128], strides = [1, 1]} : vector<1x384xf32> to vector<1x128xf32>
    %159 = vector.extract_strided_slice %156 {offsets = [0, 256], sizes = [1, 128], strides = [1, 1]} : vector<1x384xf32> to vector<1x128xf32>
    %160 = vector.extract_strided_slice %150 {offsets = [0, 384], sizes = [1, 128], strides = [1, 1]} : vector<1x512xf32> to vector<1x128xf32>
    %161 = math.tanh %160 : vector<1x128xf32>
    %162 = arith.mulf %158, %143 : vector<1x128xf32>
    %163 = arith.mulf %157, %161 : vector<1x128xf32>
    %164 = arith.addf %162, %163 : vector<1x128xf32>
    %165 = math.tanh %164 : vector<1x128xf32>
    %166 = arith.mulf %159, %165 : vector<1x128xf32>
    %c7 = arith.constant 7 : index
    %c0_55 = arith.constant 0 : index
    %167 = vector.load %arg11[%c7, %c0_55] : memref<8x512xf32, #tpu.memory_space<vmem>>, vector<1x512xf32>
    %168 = arith.truncf %166 : vector<1x128xf32> to vector<1x128xbf16>
    %c0_56 = arith.constant 0 : index
    %c0_57 = arith.constant 0 : index
    %169 = vector.load %arg6[%c0_56, %c0_57] : memref<128x512xbf16, #tpu.memory_space<vmem>>, vector<128x512xbf16>
    %cst_58 = arith.constant dense<0.000000e+00> : vector<1x512xf32>
    %170 = tpu.matmul %168, %169, %cst_58 {dimension_numbers = #tpu.dot_dimension_numbers<[1], [0], [0], [1], [0, 0, 1, 1], [], []>} : vector<1x128xbf16>, vector<128x512xbf16>, vector<1x512xf32> -> vector<1x512xf32>
    %171 = arith.addf %167, %170 : vector<1x512xf32>
    %172 = vector.extract_strided_slice %171 {offsets = [0, 0], sizes = [1, 384], strides = [1, 1]} : vector<1x512xf32> to vector<1x384xf32>
    %173 = arith.negf %172 : vector<1x384xf32>
    %174 = math.exp %173 : vector<1x384xf32>
    %cst_59 = arith.constant 1.000000e+00 : f32
    %175 = vector.broadcast %cst_59 : f32 to vector<1x384xf32>
    %176 = arith.addf %175, %174 : vector<1x384xf32>
    %177 = arith.divf %175, %176 : vector<1x384xf32>
    %178 = vector.extract_strided_slice %177 {offsets = [0, 0], sizes = [1, 128], strides = [1, 1]} : vector<1x384xf32> to vector<1x128xf32>
    %179 = vector.extract_strided_slice %177 {offsets = [0, 128], sizes = [1, 128], strides = [1, 1]} : vector<1x384xf32> to vector<1x128xf32>
    %180 = vector.extract_strided_slice %177 {offsets = [0, 256], sizes = [1, 128], strides = [1, 1]} : vector<1x384xf32> to vector<1x128xf32>
    %181 = vector.extract_strided_slice %171 {offsets = [0, 384], sizes = [1, 128], strides = [1, 1]} : vector<1x512xf32> to vector<1x128xf32>
    %182 = math.tanh %181 : vector<1x128xf32>
    %183 = arith.mulf %179, %164 : vector<1x128xf32>
    %184 = arith.mulf %178, %182 : vector<1x128xf32>
    %185 = arith.addf %183, %184 : vector<1x128xf32>
    %186 = math.tanh %185 : vector<1x128xf32>
    %187 = arith.mulf %180, %186 : vector<1x128xf32>
    %c0_60 = arith.constant 0 : index
    %c0_61 = arith.constant 0 : index
    %188 = vector.load %arg8[%c0_60, %c0_61] : memref<128x16xf32, #tpu.memory_space<vmem>>, vector<128x16xf32>
    %cst_62 = arith.constant dense<0.000000e+00> : vector<1x16xf32>
    %189 = tpu.matmul %187, %188, %cst_62 {dimension_numbers = #tpu.dot_dimension_numbers<[1], [0], [0], [1], [0, 0, 1, 1], [], []>} : vector<1x128xf32>, vector<128x16xf32>, vector<1x16xf32> -> vector<1x16xf32>
    %c0_63 = arith.constant 0 : index
    %c0_64 = arith.constant 0 : index
    %190 = vector.load %arg9[%c0_63, %c0_64] : memref<1x16xf32, #tpu.memory_space<vmem>>, vector<1x16xf32>
    %191 = arith.addf %189, %190 : vector<1x16xf32>
    %c0_65 = arith.constant 0 : index
    %c0_66 = arith.constant 0 : index
    %192 = vector.load %arg10[%c0_65, %c0_66] : memref<1x16xf32, #tpu.memory_space<vmem>>, vector<1x16xf32>
    tpu.vector_store %arg10[%c0_65, %c0_66], %191 {strides = array<i32>} : memref<1x16xf32, #tpu.memory_space<vmem>>, vector<1x16xf32>,
    return
  }
}

</mosaic_0001>

<llo_original>
// kernel: septurn_rnn_forward.1
$region0: #{septurn_rnn_forward.1}
  #allocation0 [shape = 'u32[]', space=smem, size = 0x4, offset = 0x4, fixed_abs, tag = 'smem constant byte address 0x4 - core index']
  #allocation1 [shape = 'u32[144,128]{1,0:T(1,128)}', space=vmem, size = 0x12000, scoped, tag = 'internal scratch']
  #allocation2 [shape = 'f32[8,512]{1,0:T(8,128)}', space=vmem, size = 0x4000, scoped, tag = 'scratch operand']
  %s0 = inlined_call_operand.vmem [shape: f32[8,32], index: 0, kind: input, shape index: {}]
  %s1 = inlined_call_operand.vmem [shape: f32[8,32], index: 1, kind: input, shape index: {}]
  %s2 = inlined_call_operand.vmem [shape: f32[8,32], index: 2, kind: input, shape index: {}]
  %s3 = inlined_call_operand.vmem [shape: bf16[32,512], index: 3, kind: input, shape index: {}]
  %s4 = inlined_call_operand.vmem [shape: bf16[32,512], index: 4, kind: input, shape index: {}]
  %s5 = inlined_call_operand.hbm [shape: bf16[32,512], index: 5, kind: input, shape index: {}]
  %s6 = inlined_call_operand.hbm [shape: bf16[128,512], index: 6, kind: input, shape index: {}]
  %s7 = inlined_call_operand.vmem [shape: f32[1,512], index: 7, kind: input, shape index: {}]
  %s8 = inlined_call_operand.vmem [shape: f32[128,16], index: 8, kind: input, shape index: {}]
  %s9 = inlined_call_operand.vmem [shape: f32[1,16], index: 9, kind: input, shape index: {}]
  %s10 = inlined_call_operand.hbm [shape: f32[1,16], index: 10, kind: output, shape index: {}]
  %s11 = sld [smem:[#allocation0]]
  $region58: #{septurn_rnn_forward.1} parent=0
    _
  %s13 = ssub.s32 1, %s11
  %s14 = scalar_select 0, %s13, %s11
  $region1: #{septurn_rnn_forward.1} parent=0
    #allocation3 [shape = 'u8[32768]{0}', space=vmem, size = 0x8000, scoped, tag = 'input window, operand 5, single buffered']
    #allocation4 [shape = 's32[1]{0}', space=sflag, size = 0x4, scoped, tag = 'scoped memory for septurn_rnn_forward.1']
    #allocation5 [shape = 's32[1]{0}', space=sflag, size = 0x4, scoped, tag = 'scoped memory for septurn_rnn_forward.1']
    #allocation6 [shape = 'u8[131072]{0}', space=vmem, size = 0x20000, scoped, tag = 'input window, operand 6, single buffered']
    #allocation7 [shape = 's32[1]{0}', space=sflag, size = 0x4, scoped, tag = 'scoped memory for septurn_rnn_forward.1']
    #allocation8 [shape = 'u8[512]{0}', space=vmem, size = 0x400, scoped, tag = 'output window, operand 0, single buffered']
    %15 = vsyncpa [#allocation4], 0
    %16 = vsyncpa [#allocation7], 0
    %17 = vsyncpa [#allocation5], 0
    // Predicated region
    $region2: #{septurn_rnn_forward.1} parent=1 // pred_check
      _
    $region3: #{septurn_rnn_forward.1} parent=1 // pred_check_branch
      %19 = sbr.rel (0) target = $region5
    $region4: #{septurn_rnn_forward.1} parent=1 // pred_region
      _
    $region5: #{septurn_rnn_forward.1} parent=1 // pred_fallthru
      _
    // Predicated region
    $region6: #{septurn_rnn_forward.1} parent=1 // pred_check
      _
    $region7: #{septurn_rnn_forward.1} parent=1 // pred_check_branch
      %21 = sbr.rel (0) target = $region9
    $region8: #{septurn_rnn_forward.1} parent=1 // pred_region
      _
    $region9: #{septurn_rnn_forward.1} parent=1 // pred_fallthru
      _
    // Predicated region
    $region10: #{septurn_rnn_forward.1} parent=1 // pred_check
      _
    $region11: #{septurn_rnn_forward.1} parent=1 // pred_check_branch
      %23 = sbr.rel (0) target = $region13
    $region12: #{septurn_rnn_forward.1} parent=1 // pred_region
      _
    $region13: #{septurn_rnn_forward.1} parent=1 // pred_fallthru
      _
    // Predicated region
    $region14: #{septurn_rnn_forward.1} parent=1 // pred_check
      _
    $region15: #{septurn_rnn_forward.1} parent=1 // pred_check_branch
      %25 = sbr.rel (0) target = $region17
    $region16: #{septurn_rnn_forward.1} parent=1 // pred_region
      _
    $region17: #{septurn_rnn_forward.1} parent=1 // pred_fallthru
      _
    // Predicated region
    $region18: #{septurn_rnn_forward.1} parent=1 // pred_check
      _
    $region19: #{septurn_rnn_forward.1} parent=1 // pred_check_branch
      %27 = sbr.rel (0) target = $region21
    $region20: #{septurn_rnn_forward.1} parent=1 // pred_region
      _
    $region21: #{septurn_rnn_forward.1} parent=1 // pred_fallthru
      _
    // Predicated region
    $region22: #{septurn_rnn_forward.1} parent=1 // pred_check
      _
    $region23: #{septurn_rnn_forward.1} parent=1 // pred_check_branch
      %29 = sbr.rel (0) target = $region25
    $region24: #{septurn_rnn_forward.1} parent=1 // pred_region
      %s31 = ssub.s32 1024, 1024
      %32 = vsyncadd [#allocation4], %s31
      %s33 = sshll.u32 [#allocation3], 4
      %s34 = int_to_ptr.vmem [resolvable:$true] %s33
      %39 = dma.hbm_to_vmem [thread:$0]  %s5, 1024, %s34, [#allocation4], 256, 256, 16
    $region25: #{septurn_rnn_forward.1} parent=1 // pred_fallthru
      _
    // Predicated region
    $region26: #{septurn_rnn_forward.1} parent=1 // pred_check
      _
    $region27: #{septurn_rnn_forward.1} parent=1 // pred_check_branch
      %41 = sbr.rel (0) target = $region29
    $region28: #{septurn_rnn_forward.1} parent=1 // pred_region
      %s43 = ssub.s32 4096, 4096
      %44 = vsyncadd [#allocation7], %s43
      %s45 = sshll.u32 [#allocation6], 4
      %s46 = int_to_ptr.vmem [resolvable:$true] %s45
      %51 = dma.hbm_to_vmem [thread:$0]  %s6, 4096, %s46, [#allocation7], 256, 256, 16
    $region29: #{septurn_rnn_forward.1} parent=1 // pred_fallthru
      _
    // Predicated region
    $region30: #{septurn_rnn_forward.1} parent=1 // pred_check
      _
    $region31: #{septurn_rnn_forward.1} parent=1 // pred_check_branch
      %53 = sbr.rel (0) target = $region33
    $region32: #{septurn_rnn_forward.1} parent=1 // pred_region
      _
    $region33: #{septurn_rnn_forward.1} parent=1 // pred_fallthru
      _
    // Predicated region
    $region34: #{septurn_rnn_forward.1} parent=1 // pred_check
      _
    $region35: #{septurn_rnn_forward.1} parent=1 // pred_check_branch
      %55 = sbr.rel (0) target = $region37
    $region36: #{septurn_rnn_forward.1} parent=1 // pred_region
      _
    $region37: #{septurn_rnn_forward.1} parent=1 // pred_fallthru
      _
    // Predicated region
    $region38: #{septurn_rnn_forward.1} parent=1 // pred_check
      _
    $region39: #{septurn_rnn_forward.1} parent=1 // pred_check_branch
      %57 = sbr.rel (0) target = $region41
    $region40: #{septurn_rnn_forward.1} parent=1 // pred_region
      _
    $region41: #{septurn_rnn_forward.1} parent=1 // pred_fallthru
      _
    // Predicated region
    $region42: #{septurn_rnn_forward.1} parent=1 // pred_check
      _
    $region43: #{septurn_rnn_forward.1} parent=1 // pred_check_branch
      %59 = sbr.rel (0) target = $region45
    $region44: #{septurn_rnn_forward.1} parent=1 // pred_region
      %60 = dma.done [#allocation4], 1024
    $region45: #{septurn_rnn_forward.1} parent=1 // pred_fallthru
      _
    // Predicated region
    $region46: #{septurn_rnn_forward.1} parent=1 // pred_check
      _
    $region47: #{septurn_rnn_forward.1} parent=1 // pred_check_branch
      %62 = sbr.rel (0) target = $region49
    $region48: #{septurn_rnn_forward.1} parent=1 // pred_region
      %63 = dma.done [#allocation7], 4096
    $region49: #{septurn_rnn_forward.1} parent=1 // pred_fallthru
      _
    %v65 = vld [vmem:[%s0] sm:$0xff]
    %v66 = vpack.c.bf16 %v65, %v65
    %v67 = vld [vmem:[%s3] sm:$0xff]
    %v68 = vld [vmem:[%s3 + $0x8] sm:$0xff]
    %v69 = vld [vmem:[%s3 + $0x10] sm:$0xff]
    %v70 = vld [vmem:[%s3 + $0x18] sm:$0xff]
    %v71 = vld [vmem:[%s3 + $0x20] sm:$0xff]
    %v72 = vld [vmem:[%s3 + $0x28] sm:$0xff]
    %v73 = vld [vmem:[%s3 + $0x30] sm:$0xff]
    %v74 = vld [vmem:[%s3 + $0x38] sm:$0xff]
    %v75 = vld [vmem:[%s1] sm:$0xff]
    %v76 = vpack.c.bf16 %v75, %v75
    %v77 = vld [vmem:[%s4] sm:$0xff]
    %v78 = vld [vmem:[%s4 + $0x8] sm:$0xff]
    %v79 = vld [vmem:[%s4 + $0x10] sm:$0xff]
    %v80 = vld [vmem:[%s4 + $0x18] sm:$0xff]
    %v81 = vld [vmem:[%s4 + $0x20] sm:$0xff]
    %v82 = vld [vmem:[%s4 + $0x28] sm:$0xff]
    %v83 = vld [vmem:[%s4 + $0x30] sm:$0xff]
    %v84 = vld [vmem:[%s4 + $0x38] sm:$0xff]
    %v93 = vunpack.c.l.b16 %v77
    %v94 = vunpack.c.h.b16 %v77
    %v95 = vunpack.c.l.b16 %v78
    %v96 = vunpack.c.h.b16 %v78
    %v97 = vunpack.c.l.b16 %v79
    %v98 = vunpack.c.h.b16 %v79
    %v99 = vunpack.c.l.b16 %v80
    %v100 = vunpack.c.h.b16 %v80
    %v101 = vunpack.c.l.b16 %v81
    %v102 = vunpack.c.h.b16 %v81
    %v103 = vunpack.c.l.b16 %v82
    %v104 = vunpack.c.h.b16 %v82
    %v105 = vunpack.c.l.b16 %v83
    %v106 = vunpack.c.h.b16 %v83
    %v107 = vunpack.c.l.b16 %v84
    %v108 = vunpack.c.h.b16 %v84
    %v109 = vpack.c.b16 %v97, %v93
    %v110 = vpack.c.b16 %v98, %v94
    %v111 = vpack.c.b16 %v99, %v95
    %v112 = vpack.c.b16 %v100, %v96
    %v113 = vpack.c.b16 %v105, %v101
    %v114 = vpack.c.b16 %v106, %v102
    %v115 = vpack.c.b16 %v107, %v103
    %v116 = vpack.c.b16 %v108, %v104
    %vm125 = vcmask 261120
    %v127 = vsel %vm125, %v76, 0
    %129 = vmatprep.subr.bf16.mxu0 %v110
    %130 = vmatpush1.bf16.msra.mxu0 %v109
    %131 = vmatprep.subr.bf16.mxu0 %v114
    %132 = vmatpush1.bf16.msra.mxu0 %v113
    %133 = vmatprep.subr.bf16.mxu0 0
    %134 = vmatpush1.bf16.msra.mxu0 0
    %135 = vmatprep.subr.bf16.mxu0 0
    %136 = vmatpush1.bf16.msra.mxu0 0
    %137 = vmatprep.subr.bf16.mxu0 0
    %138 = vmatpush1.bf16.msra.mxu0 0
    %139 = vmatprep.subr.bf16.mxu0 0
    %140 = vmatpush1.bf16.msra.mxu0 0
    %141 = vmatprep.subr.bf16.mxu0 0
    %142 = vmatpush1.bf16.msra.mxu0 0
    %143 = vmatprep.subr.bf16.mxu0 0
    %144 = vmatpush1.bf16.msra.mxu0 0
    %145 = vmatprep.subr.bf16.mxu0 0
    %146 = vmatpush1.bf16.msra.mxu0 0
    %147 = vmatprep.subr.bf16.mxu0 0
    %148 = vmatpush1.bf16.msra.mxu0 0
    %149 = vmatprep.subr.bf16.mxu0 0
    %150 = vmatpush1.bf16.msra.mxu0 0
    %151 = vmatprep.subr.bf16.mxu0 0
    %152 = vmatpush1.bf16.msra.mxu0 0
    %153 = vmatprep.subr.bf16.mxu0 0
    %154 = vmatpush1.bf16.msra.mxu0 0
    %155 = vmatprep.subr.bf16.mxu0 0
    %156 = vmatpush1.bf16.msra.mxu0 0
    %157 = vmatprep.subr.bf16.mxu0 0
    %158 = vmatpush1.bf16.msra.mxu0 0
    %159 = vmatprep.subr.bf16.mxu0 0
    %160 = vmatpush1.bf16.msra.mxu0 0
    %161 = vmatprep.mubr.bf16.mxu0 0
    %162 = vmatmul.mubr.bf16.gmra.mrb[0].mxu0 %v127
    %v163 = vpop.f32.mrb[0].mxu0
    %v164 = vadd.f32 0.0, %v163
    %v165 = vpop.f32.mrb[0].mxu0
    %v166 = vadd.f32 0.0, %v165
    %v167 = vpop.f32.mrb[0].mxu0
    %v168 = vpop.f32.mrb[0].mxu0
    %169 = vdwg.mxu0
    %170 = vmatprep.subr.bf16.mxu0 %v112
    %171 = vmatpush1.bf16.msra.mxu0 %v111
    %172 = vmatprep.subr.bf16.mxu0 %v116
    %173 = vmatpush1.bf16.msra.mxu0 %v115
    %174 = vmatprep.subr.bf16.mxu0 0
    %175 = vmatpush1.bf16.msra.mxu0 0
    %176 = vmatprep.subr.bf16.mxu0 0
    %177 = vmatpush1.bf16.msra.mxu0 0
    %178 = vmatprep.subr.bf16.mxu0 0
    %179 = vmatpush1.bf16.msra.mxu0 0
    %180 = vmatprep.subr.bf16.mxu0 0
    %181 = vmatpush1.bf16.msra.mxu0 0
    %182 = vmatprep.subr.bf16.mxu0 0
    %183 = vmatpush1.bf16.msra.mxu0 0
    %184 = vmatprep.subr.bf16.mxu0 0
    %185 = vmatpush1.bf16.msra.mxu0 0
    %186 = vmatprep.subr.bf16.mxu0 0
    %187 = vmatpush1.bf16.msra.mxu0 0
    %188 = vmatprep.subr.bf16.mxu0 0
    %189 = vmatpush1.bf16.msra.mxu0 0
    %190 = vmatprep.subr.bf16.mxu0 0
    %191 = vmatpush1.bf16.msra.mxu0 0
    %192 = vmatprep.subr.bf16.mxu0 0
    %193 = vmatpush1.bf16.msra.mxu0 0
    %194 = vmatprep.subr.bf16.mxu0 0
    %195 = vmatpush1.bf16.msra.mxu0 0
    %196 = vmatprep.subr.bf16.mxu0 0
    %197 = vmatpush1.bf16.msra.mxu0 0
    %198 = vmatprep.subr.bf16.mxu0 0
    %199 = vmatpush1.bf16.msra.mxu0 0
    %200 = vmatprep.subr.bf16.mxu0 0
    %201 = vmatpush1.bf16.msra.mxu0 0
    %202 = vmatprep.mubr.bf16.mxu0 0
    %203 = vmatmul.mubr.bf16.gmra.mrb[0].mxu0 %v127
    %v204 = vpop.f32.mrb[0].mxu0
    %v205 = vadd.f32 0.0, %v204
    %v206 = vpop.f32.mrb[0].mxu0
    %v207 = vadd.f32 0.0, %v206
    %v208 = vpop.f32.mrb[0].mxu0
    %v209 = vpop.f32.mrb[0].mxu0
    %210 = vdwg.mxu0
    %v219 = vunpack.c.l.b16 %v67
    %v220 = vunpack.c.h.b16 %v67
    %v221 = vunpack.c.l.b16 %v68
    %v222 = vunpack.c.h.b16 %v68
    %v223 = vunpack.c.l.b16 %v69
    %v224 = vunpack.c.h.b16 %v69
    %v225 = vunpack.c.l.b16 %v70
    %v226 = vunpack.c.h.b16 %v70
    %v227 = vunpack.c.l.b16 %v71
    %v228 = vunpack.c.h.b16 %v71
    %v229 = vunpack.c.l.b16 %v72
    %v230 = vunpack.c.h.b16 %v72
    %v231 = vunpack.c.l.b16 %v73
    %v232 = vunpack.c.h.b16 %v73
    %v233 = vunpack.c.l.b16 %v74
    %v234 = vunpack.c.h.b16 %v74
    %v235 = vpack.c.b16 %v223, %v219
    %v236 = vpack.c.b16 %v224, %v220
    %v237 = vpack.c.b16 %v225, %v221
    %v238 = vpack.c.b16 %v226, %v222
    %v239 = vpack.c.b16 %v231, %v227
    %v240 = vpack.c.b16 %v232, %v228
    %v241 = vpack.c.b16 %v233, %v229
    %v242 = vpack.c.b16 %v234, %v230
    %v252 = vsel %vm125, %v66, 0
    %254 = vmatprep.subr.bf16.mxu0 %v236
    %255 = vmatpush1.bf16.msra.mxu0 %v235
    %256 = vmatprep.subr.bf16.mxu0 %v240
    %257 = vmatpush1.bf16.msra.mxu0 %v239
    %258 = vmatprep.subr.bf16.mxu0 0
    %259 = vmatpush1.bf16.msra.mxu0 0
    %260 = vmatprep.subr.bf16.mxu0 0
    %261 = vmatpush1.bf16.msra.mxu0 0
    %262 = vmatprep.subr.bf16.mxu0 0
    %263 = vmatpush1.bf16.msra.mxu0 0
    %264 = vmatprep.subr.bf16.mxu0 0
    %265 = vmatpush1.bf16.msra.mxu0 0
    %266 = vmatprep.subr.bf16.mxu0 0
    %267 = vmatpush1.bf16.msra.mxu0 0
    %268 = vmatprep.subr.bf16.mxu0 0
    %269 = vmatpush1.bf16.msra.mxu0 0
    %270 = vmatprep.subr.bf16.mxu0 0
    %271 = vmatpush1.bf16.msra.mxu0 0
    %272 = vmatprep.subr.bf16.mxu0 0
    %273 = vmatpush1.bf16.msra.mxu0 0
    %274 = vmatprep.subr.bf16.mxu0 0
    %275 = vmatpush1.bf16.msra.mxu0 0
    %276 = vmatprep.subr.bf16.mxu0 0
    %277 = vmatpush1.bf16.msra.mxu0 0
    %278 = vmatprep.subr.bf16.mxu0 0
    %279 = vmatpush1.bf16.msra.mxu0 0
    %280 = vmatprep.subr.bf16.mxu0 0
    %281 = vmatpush1.bf16.msra.mxu0 0
    %282 = vmatprep.subr.bf16.mxu0 0
    %283 = vmatpush1.bf16.msra.mxu0 0
    %284 = vmatprep.subr.bf16.mxu0 0
    %285 = vmatpush1.bf16.msra.mxu0 0
    %286 = vmatprep.mubr.bf16.mxu0 0
    %287 = vmatmul.mubr.bf16.gmra.mrb[0].mxu0 %v252
    %v288 = vpop.f32.mrb[0].mxu0
    %v289 = vadd.f32 %v164, %v288
    %v290 = vpop.f32.mrb[0].mxu0
    %v291 = vadd.f32 %v166, %v290
    %v292 = vpop.f32.mrb[0].mxu0
    %v293 = vpop.f32.mrb[0].mxu0
    %294 = vdwg.mxu0
    %295 = vmatprep.subr.bf16.mxu0 %v238
    %296 = vmatpush1.bf16.msra.mxu0 %v237
    %297 = vmatprep.subr.bf16.mxu0 %v242
    %298 = vmatpush1.bf16.msra.mxu0 %v241
    %299 = vmatprep.subr.bf16.mxu0 0
    %300 = vmatpush1.bf16.msra.mxu0 0
    %301 = vmatprep.subr.bf16.mxu0 0
    %302 = vmatpush1.bf16.msra.mxu0 0
    %303 = vmatprep.subr.bf16.mxu0 0
    %304 = vmatpush1.bf16.msra.mxu0 0
    %305 = vmatprep.subr.bf16.mxu0 0
    %306 = vmatpush1.bf16.msra.mxu0 0
    %307 = vmatprep.subr.bf16.mxu0 0
    %308 = vmatpush1.bf16.msra.mxu0 0
    %309 = vmatprep.subr.bf16.mxu0 0
    %310 = vmatpush1.bf16.msra.mxu0 0
    %311 = vmatprep.subr.bf16.mxu0 0
    %312 = vmatpush1.bf16.msra.mxu0 0
    %313 = vmatprep.subr.bf16.mxu0 0
    %314 = vmatpush1.bf16.msra.mxu0 0
    %315 = vmatprep.subr.bf16.mxu0 0
    %316 = vmatpush1.bf16.msra.mxu0 0
    %317 = vmatprep.subr.bf16.mxu0 0
    %318 = vmatpush1.bf16.msra.mxu0 0
    %319 = vmatprep.subr.bf16.mxu0 0
    %320 = vmatpush1.bf16.msra.mxu0 0
    %321 = vmatprep.subr.bf16.mxu0 0
    %322 = vmatpush1.bf16.msra.mxu0 0
    %323 = vmatprep.subr.bf16.mxu0 0
    %324 = vmatpush1.bf16.msra.mxu0 0
    %325 = vmatprep.subr.bf16.mxu0 0
    %326 = vmatpush1.bf16.msra.mxu0 0
    %327 = vmatprep.mubr.bf16.mxu0 0
    %328 = vmatmul.mubr.bf16.gmra.mrb[0].mxu0 %v252
    %v329 = vpop.f32.mrb[0].mxu0
    %v330 = vadd.f32 %v205, %v329
    %v331 = vpop.f32.mrb[0].mxu0
    %v332 = vadd.f32 %v207, %v331
    %v333 = vpop.f32.mrb[0].mxu0
    %v334 = vpop.f32.mrb[0].mxu0
    %335 = vdwg.mxu0
    %v336 = vld [vmem:[%s2] sm:$0xff]
    %v337 = vpack.c.bf16 %v336, %v336
    %v338 = vld [vmem:[#allocation3] sm:$0xff]
    %v339 = vld [vmem:[#allocation3 + $0x8] sm:$0xff]
    %v340 = vld [vmem:[#allocation3 + $0x10] sm:$0xff]
    %v341 = vld [vmem:[#allocation3 + $0x18] sm:$0xff]
    %v342 = vld [vmem:[#allocation3 + $0x20] sm:$0xff]
    %v343 = vld [vmem:[#allocation3 + $0x28] sm:$0xff]
    %v344 = vld [vmem:[#allocation3 + $0x30] sm:$0xff]
    %v345 = vld [vmem:[#allocation3 + $0x38] sm:$0xff]
    %v354 = vunpack.c.l.b16 %v338
    %v355 = vunpack.c.h.b16 %v338
    %v356 = vunpack.c.l.b16 %v339
    %v357 = vunpack.c.h.b16 %v339
    %v358 = vunpack.c.l.b16 %v340
    %v359 = vunpack.c.h.b16 %v340
    %v360 = vunpack.c.l.b16 %v341
    %v361 = vunpack.c.h.b16 %v341
    %v362 = vunpack.c.l.b16 %v342
    %v363 = vunpack.c.h.b16 %v342
    %v364 = vunpack.c.l.b16 %v343
    %v365 = vunpack.c.h.b16 %v343
    %v366 = vunpack.c.l.b16 %v344
    %v367 = vunpack.c.h.b16 %v344
    %v368 = vunpack.c.l.b16 %v345
    %v369 = vunpack.c.h.b16 %v345
    %v370 = vpack.c.b16 %v358, %v354
    %v371 = vpack.c.b16 %v359, %v355
    %v372 = vpack.c.b16 %v360, %v356
    %v373 = vpack.c.b16 %v361, %v357
    %v374 = vpack.c.b16 %v366, %v362
    %v375 = vpack.c.b16 %v367, %v363
    %v376 = vpack.c.b16 %v368, %v364
    %v377 = vpack.c.b16 %v369, %v365
    %v387 = vsel %vm125, %v337, 0
    %389 = vmatprep.subr.bf16.mxu0 %v371
    %390 = vmatpush1.bf16.msra.mxu0 %v370
    %391 = vmatprep.subr.bf16.mxu0 %v375
    %392 = vmatpush1.bf16.msra.mxu0 %v374
    %393 = vmatprep.subr.bf16.mxu0 0
    %394 = vmatpush1.bf16.msra.mxu0 0
    %395 = vmatprep.subr.bf16.mxu0 0
    %396 = vmatpush1.bf16.msra.mxu0 0
    %397 = vmatprep.subr.bf16.mxu0 0
    %398 = vmatpush1.bf16.msra.mxu0 0
    %399 = vmatprep.subr.bf16.mxu0 0
    %400 = vmatpush1.bf16.msra.mxu0 0
    %401 = vmatprep.subr.bf16.mxu0 0
    %402 = vmatpush1.bf16.msra.mxu0 0
    %403 = vmatprep.subr.bf16.mxu0 0
    %404 = vmatpush1.bf16.msra.mxu0 0
    %405 = vmatprep.subr.bf16.mxu0 0
    %406 = vmatpush1.bf16.msra.mxu0 0
    %407 = vmatprep.subr.bf16.mxu0 0
    %408 = vmatpush1.bf16.msra.mxu0 0
    %409 = vmatprep.subr.bf16.mxu0 0
    %410 = vmatpush1.bf16.msra.mxu0 0
    %411 = vmatprep.subr.bf16.mxu0 0
    %412 = vmatpush1.bf16.msra.mxu0 0
    %413 = vmatprep.subr.bf16.mxu0 0
    %414 = vmatpush1.bf16.msra.mxu0 0
    %415 = vmatprep.subr.bf16.mxu0 0
    %416 = vmatpush1.bf16.msra.mxu0 0
    %417 = vmatprep.subr.bf16.mxu0 0
    %418 = vmatpush1.bf16.msra.mxu0 0
    %419 = vmatprep.subr.bf16.mxu0 0
    %420 = vmatpush1.bf16.msra.mxu0 0
    %421 = vmatprep.mubr.bf16.mxu0 0
    %422 = vmatmul.mubr.bf16.gmra.mrb[0].mxu0 %v387
    %v423 = vpop.f32.mrb[0].mxu0
    %v424 = vadd.f32 0.0, %v423
    %v425 = vpop.f32.mrb[0].mxu0
    %v426 = vadd.f32 0.0, %v425
    %v427 = vpop.f32.mrb[0].mxu0
    %v428 = vpop.f32.mrb[0].mxu0
    %429 = vdwg.mxu0
    %430 = vmatprep.subr.bf16.mxu0 %v373
    %431 = vmatpush1.bf16.msra.mxu0 %v372
    %432 = vmatprep.subr.bf16.mxu0 %v377
    %433 = vmatpush1.bf16.msra.mxu0 %v376
    %434 = vmatprep.subr.bf16.mxu0 0
    %435 = vmatpush1.bf16.msra.mxu0 0
    %436 = vmatprep.subr.bf16.mxu0 0
    %437 = vmatpush1.bf16.msra.mxu0 0
    %438 = vmatprep.subr.bf16.mxu0 0
    %439 = vmatpush1.bf16.msra.mxu0 0
    %440 = vmatprep.subr.bf16.mxu0 0
    %441 = vmatpush1.bf16.msra.mxu0 0
    %442 = vmatprep.subr.bf16.mxu0 0
    %443 = vmatpush1.bf16.msra.mxu0 0
    %444 = vmatprep.subr.bf16.mxu0 0
    %445 = vmatpush1.bf16.msra.mxu0 0
    %446 = vmatprep.subr.bf16.mxu0 0
    %447 = vmatpush1.bf16.msra.mxu0 0
    %448 = vmatprep.subr.bf16.mxu0 0
    %449 = vmatpush1.bf16.msra.mxu0 0
    %450 = vmatprep.subr.bf16.mxu0 0
    %451 = vmatpush1.bf16.msra.mxu0 0
    %452 = vmatprep.subr.bf16.mxu0 0
    %453 = vmatpush1.bf16.msra.mxu0 0
    %454 = vmatprep.subr.bf16.mxu0 0
    %455 = vmatpush1.bf16.msra.mxu0 0
    %456 = vmatprep.subr.bf16.mxu0 0
    %457 = vmatpush1.bf16.msra.mxu0 0
    %458 = vmatprep.subr.bf16.mxu0 0
    %459 = vmatpush1.bf16.msra.mxu0 0
    %460 = vmatprep.subr.bf16.mxu0 0
    %461 = vmatpush1.bf16.msra.mxu0 0
    %462 = vmatprep.mubr.bf16.mxu0 0
    %463 = vmatmul.mubr.bf16.gmra.mrb[0].mxu0 %v387
    %v464 = vpop.f32.mrb[0].mxu0
    %v465 = vadd.f32 0.0, %v464
    %v466 = vpop.f32.mrb[0].mxu0
    %v467 = vadd.f32 0.0, %v466
    %v468 = vpop.f32.mrb[0].mxu0
    %v469 = vpop.f32.mrb[0].mxu0
    %470 = vdwg.mxu0
    %v471 = vadd.f32 %v289, %v424
    %v472 = vadd.f32 %v291, %v426
    %v473 = vadd.f32 %v330, %v465
    %v474 = vadd.f32 %v332, %v467
    %v475 = vld [vmem:[%s7] sm:$0xf]
    %v477 = vlaneseq
    %v478 = vshrl.u32 %v477, 7
    %v479 = vsub.s32 0, %v478
    %v480 = vrot.slane %v475, %v479
    %v481 = vlaneseq
    %v482 = vshrl.u32 %v481, 7
    %v483 = vsub.s32 1, %v482
    %v484 = vrot.slane %v475, %v483
    %v485 = vlaneseq
    %v486 = vshrl.u32 %v485, 7
    %v487 = vsub.s32 2, %v486
    %v488 = vrot.slane %v475, %v487
    %v489 = vlaneseq
    %v490 = vshrl.u32 %v489, 7
    %v491 = vsub.s32 3, %v490
    %v492 = vrot.slane %v475, %v491
    %v497 = vadd.f32 %v471, %v480
    %v498 = vadd.f32 %v472, %v484
    %v499 = vadd.f32 %v473, %v488
    %v500 = vadd.f32 %v474, %v492
    %501 = vst [vmem:[#allocation2] sm:$0xff] %v497
    %502 = vst [vmem:[#allocation2 + $0x8] sm:$0xff] %v498
    %503 = vst [vmem:[#allocation2 + $0x10] sm:$0xff] %v499
    %504 = vst [vmem:[#allocation2 + $0x18] sm:$0xff] %v500
    %v505 = vld [vmem:[#allocation2] ss:$8 sm:$0xf]
    %v506 = vld [vmem:[#allocation6] sm:$0xff]
    %v507 = vld [vmem:[#allocation6 + $0x8] sm:$0xff]
    %v508 = vld [vmem:[#allocation6 + $0x10] sm:$0xff]
    %v509 = vld [vmem:[#allocation6 + $0x18] sm:$0xff]
    %v510 = vld [vmem:[#allocation6 + $0x20] sm:$0xff]
    %v511 = vld [vmem:[#allocation6 + $0x28] sm:$0xff]
    %v512 = vld [vmem:[#allocation6 + $0x30] sm:$0xff]
    %v513 = vld [vmem:[#allocation6 + $0x38] sm:$0xff]
    %v514 = vld [vmem:[#allocation6 + $0x40] sm:$0xff]
    %v515 = vld [vmem:[#allocation6 + $0x48] sm:$0xff]
    %v516 = vld [vmem:[#allocation6 + $0x50] sm:$0xff]
    %v517 = vld [vmem:[#allocation6 + $0x58] sm:$0xff]
    %v518 = vld [vmem:[#allocation6 + $0x60] sm:$0xff]
    %v519 = vld [vmem:[#allocation6 + $0x68] sm:$0xff]
    %v520 = vld [vmem:[#allocation6 + $0x70] sm:$0xff]
    %v521 = vld [vmem:[#allocation6 + $0x78] sm:$0xff]
    %v522 = vld [vmem:[#allocation6 + $0x80] sm:$0xff]
    %v523 = vld [vmem:[#allocation6 + $0x88] sm:$0xff]
    %v524 = vld [vmem:[#allocation6 + $0x90] sm:$0xff]
    %v525 = vld [vmem:[#allocation6 + $0x98] sm:$0xff]
    %v526 = vld [vmem:[#allocation6 + $0xa0] sm:$0xff]
    %v527 = vld [vmem:[#allocation6 + $0xa8] sm:$0xff]
    %v528 = vld [vmem:[#allocation6 + $0xb0] sm:$0xff]
    %v529 = vld [vmem:[#allocation6 + $0xb8] sm:$0xff]
    %v530 = vld [vmem:[#allocation6 + $0xc0] sm:$0xff]
    %v531 = vld [vmem:[#allocation6 + $0xc8] sm:$0xff]
    %v532 = vld [vmem:[#allocation6 + $0xd0] sm:$0xff]
    %v533 = vld [vmem:[#allocation6 + $0xd8] sm:$0xff]
    %v534 = vld [vmem:[#allocation6 + $0xe0] sm:$0xff]
    %v535 = vld [vmem:[#allocation6 + $0xe8] sm:$0xff]
    %v536 = vld [vmem:[#allocation6 + $0xf0] sm:$0xff]
    %v537 = vld [vmem:[#allocation6 + $0xf8] sm:$0xff]
    %v570 = vunpack.c.l.b16 %v506
    %v571 = vunpack.c.h.b16 %v506
    %v572 = vunpack.c.l.b16 %v507
    %v573 = vunpack.c.h.b16 %v507
    %v574 = vunpack.c.l.b16 %v508
    %v575 = vunpack.c.h.b16 %v508
    %v576 = vunpack.c.l.b16 %v509
    %v577 = vunpack.c.h.b16 %v509
    %v578 = vunpack.c.l.b16 %v510
    %v579 = vunpack.c.h.b16 %v510
    %v580 = vunpack.c.l.b16 %v511
    %v581 = vunpack.c.h.b16 %v511
    %v582 = vunpack.c.l.b16 %v512
    %v583 = vunpack.c.h.b16 %v512
    %v584 = vunpack.c.l.b16 %v513
    %v585 = vunpack.c.h.b16 %v513
    %v586 = vunpack.c.l.b16 %v514
    %v587 = vunpack.c.h.b16 %v514
    %v588 = vunpack.c.l.b16 %v515
    %v589 = vunpack.c.h.b16 %v515
    %v590 = vunpack.c.l.b16 %v516
    %v591 = vunpack.c.h.b16 %v516
    %v592 = vunpack.c.l.b16 %v517
    %v593 = vunpack.c.h.b16 %v517
    %v594 = vunpack.c.l.b16 %v518
    %v595 = vunpack.c.h.b16 %v518
    %v596 = vunpack.c.l.b16 %v519
    %v597 = vunpack.c.h.b16 %v519
    %v598 = vunpack.c.l.b16 %v520
    %v599 = vunpack.c.h.b16 %v520
    %v600 = vunpack.c.l.b16 %v521
    %v601 = vunpack.c.h.b16 %v521
    %v602 = vunpack.c.l.b16 %v522
    %v603 = vunpack.c.h.b16 %v522
    %v604 = vunpack.c.l.b16 %v523
    %v605 = vunpack.c.h.b16 %v523
    %v606 = vunpack.c.l.b16 %v524
    %v607 = vunpack.c.h.b16 %v524
    %v608 = vunpack.c.l.b16 %v525
    %v609 = vunpack.c.h.b16 %v525
    %v610 = vunpack.c.l.b16 %v526
    %v611 = vunpack.c.h.b16 %v526
    %v612 = vunpack.c.l.b16 %v527
    %v613 = vunpack.c.h.b16 %v527
    %v614 = vunpack.c.l.b16 %v528
    %v615 = vunpack.c.h.b16 %v528
    %v616 = vunpack.c.l.b16 %v529
    %v617 = vunpack.c.h.b16 %v529
    %v618 = vunpack.c.l.b16 %v530
    %v619 = vunpack.c.h.b16 %v530
    %v620 = vunpack.c.l.b16 %v531
    %v621 = vunpack.c.h.b16 %v531
    %v622 = vunpack.c.l.b16 %v532
    %v623 = vunpack.c.h.b16 %v532
    %v624 = vunpack.c.l.b16 %v533
    %v625 = vunpack.c.h.b16 %v533
    %v626 = vunpack.c.l.b16 %v534
    %v627 = vunpack.c.h.b16 %v534
    %v628 = vunpack.c.l.b16 %v535
    %v629 = vunpack.c.h.b16 %v535
    %v630 = vunpack.c.l.b16 %v536
    %v631 = vunpack.c.h.b16 %v536
    %v632 = vunpack.c.l.b16 %v537
    %v633 = vunpack.c.h.b16 %v537
    %v634 = vpack.c.b16 %v574, %v570
    %v635 = vpack.c.b16 %v575, %v571
    %v636 = vpack.c.b16 %v576, %v572
    %v637 = vpack.c.b16 %v577, %v573
    %v638 = vpack.c.b16 %v582, %v578
    %v639 = vpack.c.b16 %v583, %v579
    %v640 = vpack.c.b16 %v584, %v580
    %v641 = vpack.c.b16 %v585, %v581
    %v642 = vpack.c.b16 %v590, %v586
    %v643 = vpack.c.b16 %v591, %v587
    %v644 = vpack.c.b16 %v592, %v588
    %v645 = vpack.c.b16 %v593, %v589
    %v646 = vpack.c.b16 %v598, %v594
    %v647 = vpack.c.b16 %v599, %v595
    %v648 = vpack.c.b16 %v600, %v596
    %v649 = vpack.c.b16 %v601, %v597
    %v650 = vpack.c.b16 %v606, %v602
    %v651 = vpack.c.b16 %v607, %v603
    %v652 = vpack.c.b16 %v608, %v604
    %v653 = vpack.c.b16 %v609, %v605
    %v654 = vpack.c.b16 %v614, %v610
    %v655 = vpack.c.b16 %v615, %v611
    %v656 = vpack.c.b16 %v616, %v612
    %v657 = vpack.c.b16 %v617, %v613
    %v658 = vpack.c.b16 %v622, %v618
    %v659 = vpack.c.b16 %v623, %v619
    %v660 = vpack.c.b16 %v624, %v620
    %v661 = vpack.c.b16 %v625, %v621
    %v662 = vpack.c.b16 %v630, %v626
    %v663 = vpack.c.b16 %v631, %v627
    %v664 = vpack.c.b16 %v632, %v628
    %v665 = vpack.c.b16 %v633, %v629
    %698 = vmatprep.subr.bf16.mxu0 %v635
    %699 = vmatpush1.bf16.msra.mxu0 %v634
    %700 = vmatprep.subr.bf16.mxu0 %v639
    %701 = vmatpush1.bf16.msra.mxu0 %v638
    %702 = vmatprep.subr.bf16.mxu0 %v643
    %703 = vmatpush1.bf16.msra.mxu0 %v642
    %704 = vmatprep.subr.bf16.mxu0 %v647
    %705 = vmatpush1.bf16.msra.mxu0 %v646
    %706 = vmatprep.subr.bf16.mxu0 %v651
    %707 = vmatpush1.bf16.msra.mxu0 %v650
    %708 = vmatprep.subr.bf16.mxu0 %v655
    %709 = vmatpush1.bf16.msra.mxu0 %v654
    %710 = vmatprep.subr.bf16.mxu0 %v659
    %711 = vmatpush1.bf16.msra.mxu0 %v658
    %712 = vmatprep.subr.bf16.mxu0 %v663
    %713 = vmatpush1.bf16.msra.mxu0 %v662
    %714 = vmatprep.subr.bf16.mxu0 0
    %715 = vmatpush1.bf16.msra.mxu0 0
    %716 = vmatprep.subr.bf16.mxu0 0
    %717 = vmatpush1.bf16.msra.mxu0 0
    %718 = vmatprep.subr.bf16.mxu0 0
    %719 = vmatpush1.bf16.msra.mxu0 0
    %720 = vmatprep.subr.bf16.mxu0 0
    %721 = vmatpush1.bf16.msra.mxu0 0
    %722 = vmatprep.subr.bf16.mxu0 0
    %723 = vmatpush1.bf16.msra.mxu0 0
    %724 = vmatprep.subr.bf16.mxu0 0
    %725 = vmatpush1.bf16.msra.mxu0 0
    %726 = vmatprep.subr.bf16.mxu0 0
    %727 = vmatpush1.bf16.msra.mxu0 0
    %728 = vmatprep.subr.bf16.mxu0 0
    %729 = vmatpush1.bf16.msra.mxu0 0
    %730 = vmatprep.mubr.bf16.mxu0 0
    %731 = vmatmul.mubr.bf16.gmra.mrb[0].mxu0 0
    %v732 = vpop.f32.mrb[0].mxu0
    %v733 = vadd.f32 0.0, %v732
    %v734 = vpop.f32.mrb[0].mxu0
    %v735 = vadd.f32 0.0, %v734
    %v736 = vpop.f32.mrb[0].mxu0
    %v737 = vpop.f32.mrb[0].mxu0
    %738 = vdwg.mxu0
    %739 = vmatprep.subr.bf16.mxu0 %v637
    %740 = vmatpush1.bf16.msra.mxu0 %v636
    %741 = vmatprep.subr.bf16.mxu0 %v641
    %742 = vmatpush1.bf16.msra.mxu0 %v640
    %743 = vmatprep.subr.bf16.mxu0 %v645
    %744 = vmatpush1.bf16.msra.mxu0 %v644
    %745 = vmatprep.subr.bf16.mxu0 %v649
    %746 = vmatpush1.bf16.msra.mxu0 %v648
    %747 = vmatprep.subr.bf16.mxu0 %v653
    %748 = vmatpush1.bf16.msra.mxu0 %v652
    %749 = vmatprep.subr.bf16.mxu0 %v657
    %750 = vmatpush1.bf16.msra.mxu0 %v656
    %751 = vmatprep.subr.bf16.mxu0 %v661
    %752 = vmatpush1.bf16.msra.mxu0 %v660
    %753 = vmatprep.subr.bf16.mxu0 %v665
    %754 = vmatpush1.bf16.msra.mxu0 %v664
    %755 = vmatprep.subr.bf16.mxu0 0
    %756 = vmatpush1.bf16.msra.mxu0 0
    %757 = vmatprep.subr.bf16.mxu0 0
    %758 = vmatpush1.bf16.msra.mxu0 0
    %759 = vmatprep.subr.bf16.mxu0 0
    %760 = vmatpush1.bf16.msra.mxu0 0
    %761 = vmatprep.subr.bf16.mxu0 0
    %762 = vmatpush1.bf16.msra.mxu0 0
    %763 = vmatprep.subr.bf16.mxu0 0
    %764 = vmatpush1.bf16.msra.mxu0 0
    %765 = vmatprep.subr.bf16.mxu0 0
    %766 = vmatpush1.bf16.msra.mxu0 0
    %767 = vmatprep.subr.bf16.mxu0 0
    %768 = vmatpush1.bf16.msra.mxu0 0
    %769 = vmatprep.subr.bf16.mxu0 0
    %770 = vmatpush1.bf16.msra.mxu0 0
    %771 = vmatprep.mubr.bf16.mxu0 0
    %772 = vmatmul.mubr.bf16.gmra.mrb[0].mxu0 0
    %v773 = vpop.f32.mrb[0].mxu0
    %v774 = vadd.f32 0.0, %v773
    %v775 = vpop.f32.mrb[0].mxu0
    %v776 = vadd.f32 0.0, %v775
    %v777 = vpop.f32.mrb[0].mxu0
    %v778 = vpop.f32.mrb[0].mxu0
    %779 = vdwg.mxu0
    %v784 = vcombine.low %v733, %v735
    %v785 = vcombine.low %v774, %v776
    %v787 = vunpack.c.l.s4 1966171168
    %v788 = vunpack.c.0.s8 %v787
    %v789 = vlaneseq
    %v790 = vshrl.u32 %v789, 7
    %v791 = vsub.s32 %v788, %v790
    %v792 = vrot.slane %v784, %v791
    %v794 = vunpack.c.l.s4 1966171168
    %v795 = vunpack.c.0.s8 %v794
    %v796 = vlaneseq
    %v797 = vshrl.u32 %v796, 7
    %v798 = vsub.s32 %v795, %v797
    %v799 = vrot.slane %v785, %v798
    %v800 = vcombine.low %v792, %v799
    %v802 = vunpack.c.l.s4 1966171168
    %v803 = vunpack.c.0.s8 %v802
    %v804 = vlaneseq
    %v805 = vshrl.u32 %v804, 7
    %v806 = vsub.s32 %v803, %v805
    %v807 = vrot.slane %v800, %v806
    %v809 = vadd.f32 %v505, %v807
    %v810 = vxor.u32 %v809, 2147483648
    %v811 = vmul.f32 %v810, 1.442695
    %v812 = vpow.pop %v811
    %v813 = vadd.f32 %v812, 1.0
    %v814 = vrcp.pop %v813
    %v815 = vmul.f32 1.0, %v814
    %v817 = vrot.slane %v809, 3
    %v819 = vtanh.pop %v817
    %v821 = vrot.slane %v815, 1
    %v823 = vmul.f32 %v821, 0.0
    %v824 = vmul.f32 %v815, %v819
    %v825 = vadd.f32 %v823, %v824
    %v826 = vtanh.pop %v825
    %v827 = vrot.slane %v815, 2
    %v829 = vmul.f32 %v827, %v826
    %s830 = scalar_lea.vmem [#allocation2], 1
    %v831 = vld [vmem:[%s830] ss:$8 sm:$0xf]
    %v832 = vpack.c.bf16 %v829, %v829
    %833 = vmatprep.subr.bf16.mxu0 %v635
    %834 = vmatpush1.bf16.msra.mxu0 %v634
    %835 = vmatprep.subr.bf16.mxu0 %v639
    %836 = vmatpush1.bf16.msra.mxu0 %v638
    %837 = vmatprep.subr.bf16.mxu0 %v643
    %838 = vmatpush1.bf16.msra.mxu0 %v642
    %839 = vmatprep.subr.bf16.mxu0 %v647
    %840 = vmatpush1.bf16.msra.mxu0 %v646
    %841 = vmatprep.subr.bf16.mxu0 %v651
    %842 = vmatpush1.bf16.msra.mxu0 %v650
    %843 = vmatprep.subr.bf16.mxu0 %v655
    %844 = vmatpush1.bf16.msra.mxu0 %v654
    %845 = vmatprep.subr.bf16.mxu0 %v659
    %846 = vmatpush1.bf16.msra.mxu0 %v658
    %847 = vmatprep.subr.bf16.mxu0 %v663
    %848 = vmatpush1.bf16.msra.mxu0 %v662
    %849 = vmatprep.subr.bf16.mxu0 0
    %850 = vmatpush1.bf16.msra.mxu0 0
    %851 = vmatprep.subr.bf16.mxu0 0
    %852 = vmatpush1.bf16.msra.mxu0 0
    %853 = vmatprep.subr.bf16.mxu0 0
    %854 = vmatpush1.bf16.msra.mxu0 0
    %855 = vmatprep.subr.bf16.mxu0 0
    %856 = vmatpush1.bf16.msra.mxu0 0
    %857 = vmatprep.subr.bf16.mxu0 0
    %858 = vmatpush1.bf16.msra.mxu0 0
    %859 = vmatprep.subr.bf16.mxu0 0
    %860 = vmatpush1.bf16.msra.mxu0 0
    %861 = vmatprep.subr.bf16.mxu0 0
    %862 = vmatpush1.bf16.msra.mxu0 0
    %863 = vmatprep.subr.bf16.mxu0 0
    %864 = vmatpush1.bf16.msra.mxu0 0
    %865 = vmatprep.mubr.bf16.mxu0 0
    %866 = vmatmul.mubr.bf16.gmra.mrb[0].mxu0 %v832
    %v867 = vpop.f32.mrb[0].mxu0
    %v868 = vadd.f32 0.0, %v867
    %v869 = vpop.f32.mrb[0].mxu0
    %v870 = vadd.f32 0.0, %v869
    %v871 = vpop.f32.mrb[0].mxu0
    %v872 = vpop.f32.mrb[0].mxu0
    %873 = vdwg.mxu0
    %874 = vmatprep.subr.bf16.mxu0 %v637
    %875 = vmatpush1.bf16.msra.mxu0 %v636
    %876 = vmatprep.subr.bf16.mxu0 %v641
    %877 = vmatpush1.bf16.msra.mxu0 %v640
    %878 = vmatprep.subr.bf16.mxu0 %v645
    %879 = vmatpush1.bf16.msra.mxu0 %v644
    %880 = vmatprep.subr.bf16.mxu0 %v649
    %881 = vmatpush1.bf16.msra.mxu0 %v648
    %882 = vmatprep.subr.bf16.mxu0 %v653
    %883 = vmatpush1.bf16.msra.mxu0 %v652
    %884 = vmatprep.subr.bf16.mxu0 %v657
    %885 = vmatpush1.bf16.msra.mxu0 %v656
    %886 = vmatprep.subr.bf16.mxu0 %v661
    %887 = vmatpush1.bf16.msra.mxu0 %v660
    %888 = vmatprep.subr.bf16.mxu0 %v665
    %889 = vmatpush1.bf16.msra.mxu0 %v664
    %890 = vmatprep.subr.bf16.mxu0 0
    %891 = vmatpush1.bf16.msra.mxu0 0
    %892 = vmatprep.subr.bf16.mxu0 0
    %893 = vmatpush1.bf16.msra.mxu0 0
    %894 = vmatprep.subr.bf16.mxu0 0
    %895 = vmatpush1.bf16.msra.mxu0 0
    %896 = vmatprep.subr.bf16.mxu0 0
    %897 = vmatpush1.bf16.msra.mxu0 0
    %898 = vmatprep.subr.bf16.mxu0 0
    %899 = vmatpush1.bf16.msra.mxu0 0
    %900 = vmatprep.subr.bf16.mxu0 0
    %901 = vmatpush1.bf16.msra.mxu0 0
    %902 = vmatprep.subr.bf16.mxu0 0
    %903 = vmatpush1.bf16.msra.mxu0 0
    %904 = vmatprep.subr.bf16.mxu0 0
    %905 = vmatpush1.bf16.msra.mxu0 0
    %906 = vmatprep.mubr.bf16.mxu0 0
    %907 = vmatmul.mubr.bf16.gmra.mrb[0].mxu0 %v832
    %v908 = vpop.f32.mrb[0].mxu0
    %v909 = vadd.f32 0.0, %v908
    %v910 = vpop.f32.mrb[0].mxu0
    %v911 = vadd.f32 0.0, %v910
    %v912 = vpop.f32.mrb[0].mxu0
    %v913 = vpop.f32.mrb[0].mxu0
    %914 = vdwg.mxu0
    %v919 = vcombine.low %v868, %v870
    %v920 = vcombine.low %v909, %v911
    %v922 = vunpack.c.l.s4 1966171168
    %v923 = vunpack.c.0.s8 %v922
    %v924 = vlaneseq
    %v925 = vshrl.u32 %v924, 7
    %v926 = vsub.s32 %v923, %v925
    %v927 = vrot.slane %v919, %v926
    %v929 = vunpack.c.l.s4 1966171168
    %v930 = vunpack.c.0.s8 %v929
    %v931 = vlaneseq
    %v932 = vshrl.u32 %v931, 7
    %v933 = vsub.s32 %v930, %v932
    %v934 = vrot.slane %v920, %v933
    %v935 = vcombine.low %v927, %v934
    %v937 = vunpack.c.l.s4 1966171168
    %v938 = vunpack.c.0.s8 %v937
    %v939 = vlaneseq
    %v940 = vshrl.u32 %v939, 7
    %v941 = vsub.s32 %v938, %v940
    %v942 = vrot.slane %v935, %v941
    %v944 = vadd.f32 %v831, %v942
    %v945 = vxor.u32 %v944, 2147483648
    %v946 = vmul.f32 %v945, 1.442695
    %v947 = vpow.pop %v946
    %v948 = vadd.f32 %v947, 1.0
    %v949 = vrcp.pop %v948
    %v950 = vmul.f32 1.0, %v949
    %v952 = vrot.slane %v944, 3
    %v954 = vtanh.pop %v952
    %v956 = vrot.slane %v950, 1
    %v958 = vmul.f32 %v956, %v825
    %v959 = vmul.f32 %v950, %v954
    %v960 = vadd.f32 %v958, %v959
    %v961 = vtanh.pop %v960
    %v962 = vrot.slane %v950, 2
    %v964 = vmul.f32 %v962, %v961
    %s965 = scalar_lea.vmem [#allocation2], 2
    %v966 = vld [vmem:[%s965] ss:$8 sm:$0xf]
    %v967 = vpack.c.bf16 %v964, %v964
    %968 = vmatprep.subr.bf16.mxu0 %v635
    %969 = vmatpush1.bf16.msra.mxu0 %v634
    %970 = vmatprep.subr.bf16.mxu0 %v639
    %971 = vmatpush1.bf16.msra.mxu0 %v638
    %972 = vmatprep.subr.bf16.mxu0 %v643
    %973 = vmatpush1.bf16.msra.mxu0 %v642
    %974 = vmatprep.subr.bf16.mxu0 %v647
    %975 = vmatpush1.bf16.msra.mxu0 %v646
    %976 = vmatprep.subr.bf16.mxu0 %v651
    %977 = vmatpush1.bf16.msra.mxu0 %v650
    %978 = vmatprep.subr.bf16.mxu0 %v655
    %979 = vmatpush1.bf16.msra.mxu0 %v654
    %980 = vmatprep.subr.bf16.mxu0 %v659
    %981 = vmatpush1.bf16.msra.mxu0 %v658
    %982 = vmatprep.subr.bf16.mxu0 %v663
    %983 = vmatpush1.bf16.msra.mxu0 %v662
    %984 = vmatprep.subr.bf16.mxu0 0
    %985 = vmatpush1.bf16.msra.mxu0 0
    %986 = vmatprep.subr.bf16.mxu0 0
    %987 = vmatpush1.bf16.msra.mxu0 0
    %988 = vmatprep.subr.bf16.mxu0 0
    %989 = vmatpush1.bf16.msra.mxu0 0
    %990 = vmatprep.subr.bf16.mxu0 0
    %991 = vmatpush1.bf16.msra.mxu0 0
    %992 = vmatprep.subr.bf16.mxu0 0
    %993 = vmatpush1.bf16.msra.mxu0 0
    %994 = vmatprep.subr.bf16.mxu0 0
    %995 = vmatpush1.bf16.msra.mxu0 0
    %996 = vmatprep.subr.bf16.mxu0 0
    %997 = vmatpush1.bf16.msra.mxu0 0
    %998 = vmatprep.subr.bf16.mxu0 0
    %999 = vmatpush1.bf16.msra.mxu0 0
    %1000 = vmatprep.mubr.bf16.mxu0 0
    %1001 = vmatmul.mubr.bf16.gmra.mrb[0].mxu0 %v967
    %v1002 = vpop.f32.mrb[0].mxu0
    %v1003 = vadd.f32 0.0, %v1002
    %v1004 = vpop.f32.mrb[0].mxu0
    %v1005 = vadd.f32 0.0, %v1004
    %v1006 = vpop.f32.mrb[0].mxu0
    %v1007 = vpop.f32.mrb[0].mxu0
    %1008 = vdwg.mxu0
    %1009 = vmatprep.subr.bf16.mxu0 %v637
    %1010 = vmatpush1.bf16.msra.mxu0 %v636
    %1011 = vmatprep.subr.bf16.mxu0 %v641
    %1012 = vmatpush1.bf16.msra.mxu0 %v640
    %1013 = vmatprep.subr.bf16.mxu0 %v645
    %1014 = vmatpush1.bf16.msra.mxu0 %v644
    %1015 = vmatprep.subr.bf16.mxu0 %v649
    %1016 = vmatpush1.bf16.msra.mxu0 %v648
    %1017 = vmatprep.subr.bf16.mxu0 %v653
    %1018 = vmatpush1.bf16.msra.mxu0 %v652
    %1019 = vmatprep.subr.bf16.mxu0 %v657
    %1020 = vmatpush1.bf16.msra.mxu0 %v656
    %1021 = vmatprep.subr.bf16.mxu0 %v661
    %1022 = vmatpush1.bf16.msra.mxu0 %v660
    %1023 = vmatprep.subr.bf16.mxu0 %v665
    %1024 = vmatpush1.bf16.msra.mxu0 %v664
    %1025 = vmatprep.subr.bf16.mxu0 0
    %1026 = vmatpush1.bf16.msra.mxu0 0
    %1027 = vmatprep.subr.bf16.mxu0 0
    %1028 = vmatpush1.bf16.msra.mxu0 0
    %1029 = vmatprep.subr.bf16.mxu0 0
    %1030 = vmatpush1.bf16.msra.mxu0 0
    %1031 = vmatprep.subr.bf16.mxu0 0
    %1032 = vmatpush1.bf16.msra.mxu0 0
    %1033 = vmatprep.subr.bf16.mxu0 0
    %1034 = vmatpush1.bf16.msra.mxu0 0
    %1035 = vmatprep.subr.bf16.mxu0 0
    %1036 = vmatpush1.bf16.msra.mxu0 0
    %1037 = vmatprep.subr.bf16.mxu0 0
    %1038 = vmatpush1.bf16.msra.mxu0 0
    %1039 = vmatprep.subr.bf16.mxu0 0
    %1040 = vmatpush1.bf16.msra.mxu0 0
    %1041 = vmatprep.mubr.bf16.mxu0 0
    %1042 = vmatmul.mubr.bf16.gmra.mrb[0].mxu0 %v967
    %v1043 = vpop.f32.mrb[0].mxu0
    %v1044 = vadd.f32 0.0, %v1043
    %v1045 = vpop.f32.mrb[0].mxu0
    %v1046 = vadd.f32 0.0, %v1045
    %v1047 = vpop.f32.mrb[0].mxu0
    %v1048 = vpop.f32.mrb[0].mxu0
    %1049 = vdwg.mxu0
    %v1054 = vcombine.low %v1003, %v1005
    %v1055 = vcombine.low %v1044, %v1046
    %v1057 = vunpack.c.l.s4 1966171168
    %v1058 = vunpack.c.0.s8 %v1057
    %v1059 = vlaneseq
    %v1060 = vshrl.u32 %v1059, 7
    %v1061 = vsub.s32 %v1058, %v1060
    %v1062 = vrot.slane %v1054, %v1061
    %v1064 = vunpack.c.l.s4 1966171168
    %v1065 = vunpack.c.0.s8 %v1064
    %v1066 = vlaneseq
    %v1067 = vshrl.u32 %v1066, 7
    %v1068 = vsub.s32 %v1065, %v1067
    %v1069 = vrot.slane %v1055, %v1068
    %v1070 = vcombine.low %v1062, %v1069
    %v1072 = vunpack.c.l.s4 1966171168
    %v1073 = vunpack.c.0.s8 %v1072
    %v1074 = vlaneseq
    %v1075 = vshrl.u32 %v1074, 7
    %v1076 = vsub.s32 %v1073, %v1075
    %v1077 = vrot.slane %v1070, %v1076
    %v1079 = vadd.f32 %v966, %v1077
    %v1080 = vxor.u32 %v1079, 2147483648
    %v1081 = vmul.f32 %v1080, 1.442695
    %v1082 = vpow.pop %v1081
    %v1083 = vadd.f32 %v1082, 1.0
    %v1084 = vrcp.pop %v1083
    %v1085 = vmul.f32 1.0, %v1084
    %v1087 = vrot.slane %v1079, 3
    %v1089 = vtanh.pop %v1087
    %v1091 = vrot.slane %v1085, 1
    %v1093 = vmul.f32 %v1091, %v960
    %v1094 = vmul.f32 %v1085, %v1089
    %v1095 = vadd.f32 %v1093, %v1094
    %v1096 = vtanh.pop %v1095
    %v1097 = vrot.slane %v1085, 2
    %v1099 = vmul.f32 %v1097, %v1096
    %s1100 = scalar_lea.vmem [#allocation2], 3
    %v1101 = vld [vmem:[%s1100] ss:$8 sm:$0xf]
    %v1102 = vpack.c.bf16 %v1099, %v1099
    %1103 = vmatprep.subr.bf16.mxu0 %v635
    %1104 = vmatpush1.bf16.msra.mxu0 %v634
    %1105 = vmatprep.subr.bf16.mxu0 %v639
    %1106 = vmatpush1.bf16.msra.mxu0 %v638
    %1107 = vmatprep.subr.bf16.mxu0 %v643
    %1108 = vmatpush1.bf16.msra.mxu0 %v642
    %1109 = vmatprep.subr.bf16.mxu0 %v647
    %1110 = vmatpush1.bf16.msra.mxu0 %v646
    %1111 = vmatprep.subr.bf16.mxu0 %v651
    %1112 = vmatpush1.bf16.msra.mxu0 %v650
    %1113 = vmatprep.subr.bf16.mxu0 %v655
    %1114 = vmatpush1.bf16.msra.mxu0 %v654
    %1115 = vmatprep.subr.bf16.mxu0 %v659
    %1116 = vmatpush1.bf16.msra.mxu0 %v658
    %1117 = vmatprep.subr.bf16.mxu0 %v663
    %1118 = vmatpush1.bf16.msra.mxu0 %v662
    %1119 = vmatprep.subr.bf16.mxu0 0
    %1120 = vmatpush1.bf16.msra.mxu0 0
    %1121 = vmatprep.subr.bf16.mxu0 0
    %1122 = vmatpush1.bf16.msra.mxu0 0
    %1123 = vmatprep.subr.bf16.mxu0 0
    %1124 = vmatpush1.bf16.msra.mxu0 0
    %1125 = vmatprep.subr.bf16.mxu0 0
    %1126 = vmatpush1.bf16.msra.mxu0 0
    %1127 = vmatprep.subr.bf16.mxu0 0
    %1128 = vmatpush1.bf16.msra.mxu0 0
    %1129 = vmatprep.subr.bf16.mxu0 0
    %1130 = vmatpush1.bf16.msra.mxu0 0
    %1131 = vmatprep.subr.bf16.mxu0 0
    %1132 = vmatpush1.bf16.msra.mxu0 0
    %1133 = vmatprep.subr.bf16.mxu0 0
    %1134 = vmatpush1.bf16.msra.mxu0 0
    %1135 = vmatprep.mubr.bf16.mxu0 0
    %1136 = vmatmul.mubr.bf16.gmra.mrb[0].mxu0 %v1102
    %v1137 = vpop.f32.mrb[0].mxu0
    %v1138 = vadd.f32 0.0, %v1137
    %v1139 = vpop.f32.mrb[0].mxu0
    %v1140 = vadd.f32 0.0, %v1139
    %v1141 = vpop.f32.mrb[0].mxu0
    %v1142 = vpop.f32.mrb[0].mxu0
    %1143 = vdwg.mxu0
    %1144 = vmatprep.subr.bf16.mxu0 %v637
    %1145 = vmatpush1.bf16.msra.mxu0 %v636
    %1146 = vmatprep.subr.bf16.mxu0 %v641
    %1147 = vmatpush1.bf16.msra.mxu0 %v640
    %1148 = vmatprep.subr.bf16.mxu0 %v645
    %1149 = vmatpush1.bf16.msra.mxu0 %v644
    %1150 = vmatprep.subr.bf16.mxu0 %v649
    %1151 = vmatpush1.bf16.msra.mxu0 %v648
    %1152 = vmatprep.subr.bf16.mxu0 %v653
    %1153 = vmatpush1.bf16.msra.mxu0 %v652
    %1154 = vmatprep.subr.bf16.mxu0 %v657
    %1155 = vmatpush1.bf16.msra.mxu0 %v656
    %1156 = vmatprep.subr.bf16.mxu0 %v661
    %1157 = vmatpush1.bf16.msra.mxu0 %v660
    %1158 = vmatprep.subr.bf16.mxu0 %v665
    %1159 = vmatpush1.bf16.msra.mxu0 %v664
    %1160 = vmatprep.subr.bf16.mxu0 0
    %1161 = vmatpush1.bf16.msra.mxu0 0
    %1162 = vmatprep.subr.bf16.mxu0 0
    %1163 = vmatpush1.bf16.msra.mxu0 0
    %1164 = vmatprep.subr.bf16.mxu0 0
    %1165 = vmatpush1.bf16.msra.mxu0 0
    %1166 = vmatprep.subr.bf16.mxu0 0
    %1167 = vmatpush1.bf16.msra.mxu0 0
    %1168 = vmatprep.subr.bf16.mxu0 0
    %1169 = vmatpush1.bf16.msra.mxu0 0
    %1170 = vmatprep.subr.bf16.mxu0 0
    %1171 = vmatpush1.bf16.msra.mxu0 0
    %1172 = vmatprep.subr.bf16.mxu0 0
    %1173 = vmatpush1.bf16.msra.mxu0 0
    %1174 = vmatprep.subr.bf16.mxu0 0
    %1175 = vmatpush1.bf16.msra.mxu0 0
    %1176 = vmatprep.mubr.bf16.mxu0 0
    %1177 = vmatmul.mubr.bf16.gmra.mrb[0].mxu0 %v1102
    %v1178 = vpop.f32.mrb[0].mxu0
    %v1179 = vadd.f32 0.0, %v1178
    %v1180 = vpop.f32.mrb[0].mxu0
    %v1181 = vadd.f32 0.0, %v1180
    %v1182 = vpop.f32.mrb[0].mxu0
    %v1183 = vpop.f32.mrb[0].mxu0
    %1184 = vdwg.mxu0
    %v1189 = vcombine.low %v1138, %v1140
    %v1190 = vcombine.low %v1179, %v1181
    %v1192 = vunpack.c.l.s4 1966171168
    %v1193 = vunpack.c.0.s8 %v1192
    %v1194 = vlaneseq
    %v1195 = vshrl.u32 %v1194, 7
    %v1196 = vsub.s32 %v1193, %v1195
    %v1197 = vrot.slane %v1189, %v1196
    %v1199 = vunpack.c.l.s4 1966171168
    %v1200 = vunpack.c.0.s8 %v1199
    %v1201 = vlaneseq
    %v1202 = vshrl.u32 %v1201, 7
    %v1203 = vsub.s32 %v1200, %v1202
    %v1204 = vrot.slane %v1190, %v1203
    %v1205 = vcombine.low %v1197, %v1204
    %v1207 = vunpack.c.l.s4 1966171168
    %v1208 = vunpack.c.0.s8 %v1207
    %v1209 = vlaneseq
    %v1210 = vshrl.u32 %v1209, 7
    %v1211 = vsub.s32 %v1208, %v1210
    %v1212 = vrot.slane %v1205, %v1211
    %v1214 = vadd.f32 %v1101, %v1212
    %v1215 = vxor.u32 %v1214, 2147483648
    %v1216 = vmul.f32 %v1215, 1.442695
    %v1217 = vpow.pop %v1216
    %v1218 = vadd.f32 %v1217, 1.0
    %v1219 = vrcp.pop %v1218
    %v1220 = vmul.f32 1.0, %v1219
    %v1222 = vrot.slane %v1214, 3
    %v1224 = vtanh.pop %v1222
    %v1226 = vrot.slane %v1220, 1
    %v1228 = vmul.f32 %v1226, %v1095
    %v1229 = vmul.f32 %v1220, %v1224
    %v1230 = vadd.f32 %v1228, %v1229
    %v1231 = vtanh.pop %v1230
    %v1232 = vrot.slane %v1220, 2
    %v1234 = vmul.f32 %v1232, %v1231
    %s1235 = scalar_lea.vmem [#allocation2], 4
    %v1236 = vld [vmem:[%s1235] ss:$8 sm:$0xf]
    %v1237 = vpack.c.bf16 %v1234, %v1234
    %1238 = vmatprep.subr.bf16.mxu0 %v635
    %1239 = vmatpush1.bf16.msra.mxu0 %v634
    %1240 = vmatprep.subr.bf16.mxu0 %v639
    %1241 = vmatpush1.bf16.msra.mxu0 %v638
    %1242 = vmatprep.subr.bf16.mxu0 %v643
    %1243 = vmatpush1.bf16.msra.mxu0 %v642
    %1244 = vmatprep.subr.bf16.mxu0 %v647
    %1245 = vmatpush1.bf16.msra.mxu0 %v646
    %1246 = vmatprep.subr.bf16.mxu0 %v651
    %1247 = vmatpush1.bf16.msra.mxu0 %v650
    %1248 = vmatprep.subr.bf16.mxu0 %v655
    %1249 = vmatpush1.bf16.msra.mxu0 %v654
    %1250 = vmatprep.subr.bf16.mxu0 %v659
    %1251 = vmatpush1.bf16.msra.mxu0 %v658
    %1252 = vmatprep.subr.bf16.mxu0 %v663
    %1253 = vmatpush1.bf16.msra.mxu0 %v662
    %1254 = vmatprep.subr.bf16.mxu0 0
    %1255 = vmatpush1.bf16.msra.mxu0 0
    %1256 = vmatprep.subr.bf16.mxu0 0
    %1257 = vmatpush1.bf16.msra.mxu0 0
    %1258 = vmatprep.subr.bf16.mxu0 0
    %1259 = vmatpush1.bf16.msra.mxu0 0
    %1260 = vmatprep.subr.bf16.mxu0 0
    %1261 = vmatpush1.bf16.msra.mxu0 0
    %1262 = vmatprep.subr.bf16.mxu0 0
    %1263 = vmatpush1.bf16.msra.mxu0 0
    %1264 = vmatprep.subr.bf16.mxu0 0
    %1265 = vmatpush1.bf16.msra.mxu0 0
    %1266 = vmatprep.subr.bf16.mxu0 0
    %1267 = vmatpush1.bf16.msra.mxu0 0
    %1268 = vmatprep.subr.bf16.mxu0 0
    %1269 = vmatpush1.bf16.msra.mxu0 0
    %1270 = vmatprep.mubr.bf16.mxu0 0
    %1271 = vmatmul.mubr.bf16.gmra.mrb[0].mxu0 %v1237
    %v1272 = vpop.f32.mrb[0].mxu0
    %v1273 = vadd.f32 0.0, %v1272
    %v1274 = vpop.f32.mrb[0].mxu0
    %v1275 = vadd.f32 0.0, %v1274
    %v1276 = vpop.f32.mrb[0].mxu0
    %v1277 = vpop.f32.mrb[0].mxu0
    %1278 = vdwg.mxu0
    %1279 = vmatprep.subr.bf16.mxu0 %v637
    %1280 = vmatpush1.bf16.msra.mxu0 %v636
    %1281 = vmatprep.subr.bf16.mxu0 %v641
    %1282 = vmatpush1.bf16.msra.mxu0 %v640
    %1283 = vmatprep.subr.bf16.mxu0 %v645
    %1284 = vmatpush1.bf16.msra.mxu0 %v644
    %1285 = vmatprep.subr.bf16.mxu0 %v649
    %1286 = vmatpush1.bf16.msra.mxu0 %v648
    %1287 = vmatprep.subr.bf16.mxu0 %v653
    %1288 = vmatpush1.bf16.msra.mxu0 %v652
    %1289 = vmatprep.subr.bf16.mxu0 %v657
    %1290 = vmatpush1.bf16.msra.mxu0 %v656
    %1291 = vmatprep.subr.bf16.mxu0 %v661
    %1292 = vmatpush1.bf16.msra.mxu0 %v660
    %1293 = vmatprep.subr.bf16.mxu0 %v665
    %1294 = vmatpush1.bf16.msra.mxu0 %v664
    %1295 = vmatprep.subr.bf16.mxu0 0
    %1296 = vmatpush1.bf16.msra.mxu0 0
    %1297 = vmatprep.subr.bf16.mxu0 0
    %1298 = vmatpush1.bf16.msra.mxu0 0
    %1299 = vmatprep.subr.bf16.mxu0 0
    %1300 = vmatpush1.bf16.msra.mxu0 0
    %1301 = vmatprep.subr.bf16.mxu0 0
    %1302 = vmatpush1.bf16.msra.mxu0 0
    %1303 = vmatprep.subr.bf16.mxu0 0
    %1304 = vmatpush1.bf16.msra.mxu0 0
    %1305 = vmatprep.subr.bf16.mxu0 0
    %1306 = vmatpush1.bf16.msra.mxu0 0
    %1307 = vmatprep.subr.bf16.mxu0 0
    %1308 = vmatpush1.bf16.msra.mxu0 0
    %1309 = vmatprep.subr.bf16.mxu0 0
    %1310 = vmatpush1.bf16.msra.mxu0 0
    %1311 = vmatprep.mubr.bf16.mxu0 0
    %1312 = vmatmul.mubr.bf16.gmra.mrb[0].mxu0 %v1237
    %v1313 = vpop.f32.mrb[0].mxu0
    %v1314 = vadd.f32 0.0, %v1313
    %v1315 = vpop.f32.mrb[0].mxu0
    %v1316 = vadd.f32 0.0, %v1315
    %v1317 = vpop.f32.mrb[0].mxu0
    %v1318 = vpop.f32.mrb[0].mxu0
    %1319 = vdwg.mxu0
    %v1324 = vcombine.low %v1273, %v1275
    %v1325 = vcombine.low %v1314, %v1316
    %v1327 = vunpack.c.l.s4 1966171168
    %v1328 = vunpack.c.0.s8 %v1327
    %v1329 = vlaneseq
    %v1330 = vshrl.u32 %v1329, 7
    %v1331 = vsub.s32 %v1328, %v1330
    %v1332 = vrot.slane %v1324, %v1331
    %v1334 = vunpack.c.l.s4 1966171168
    %v1335 = vunpack.c.0.s8 %v1334
    %v1336 = vlaneseq
    %v1337 = vshrl.u32 %v1336, 7
    %v1338 = vsub.s32 %v1335, %v1337
    %v1339 = vrot.slane %v1325, %v1338
    %v1340 = vcombine.low %v1332, %v1339
    %v1342 = vunpack.c.l.s4 1966171168
    %v1343 = vunpack.c.0.s8 %v1342
    %v1344 = vlaneseq
    %v1345 = vshrl.u32 %v1344, 7
    %v1346 = vsub.s32 %v1343, %v1345
    %v1347 = vrot.slane %v1340, %v1346
    %v1349 = vadd.f32 %v1236, %v1347
    %v1350 = vxor.u32 %v1349, 2147483648
    %v1351 = vmul.f32 %v1350, 1.442695
    %v1352 = vpow.pop %v1351
    %v1353 = vadd.f32 %v1352, 1.0
    %v1354 = vrcp.pop %v1353
    %v1355 = vmul.f32 1.0, %v1354
    %v1357 = vrot.slane %v1349, 3
    %v1359 = vtanh.pop %v1357
    %v1361 = vrot.slane %v1355, 1
    %v1363 = vmul.f32 %v1361, %v1230
    %v1364 = vmul.f32 %v1355, %v1359
    %v1365 = vadd.f32 %v1363, %v1364
    %v1366 = vtanh.pop %v1365
    %v1367 = vrot.slane %v1355, 2
    %v1369 = vmul.f32 %v1367, %v1366
    %s1370 = scalar_lea.vmem [#allocation2], 5
    %v1371 = vld [vmem:[%s1370] ss:$8 sm:$0xf]
    %v1372 = vpack.c.bf16 %v1369, %v1369
    %1373 = vmatprep.subr.bf16.mxu0 %v635
    %1374 = vmatpush1.bf16.msra.mxu0 %v634
    %1375 = vmatprep.subr.bf16.mxu0 %v639
    %1376 = vmatpush1.bf16.msra.mxu0 %v638
    %1377 = vmatprep.subr.bf16.mxu0 %v643
    %1378 = vmatpush1.bf16.msra.mxu0 %v642
    %1379 = vmatprep.subr.bf16.mxu0 %v647
    %1380 = vmatpush1.bf16.msra.mxu0 %v646
    %1381 = vmatprep.subr.bf16.mxu0 %v651
    %1382 = vmatpush1.bf16.msra.mxu0 %v650
    %1383 = vmatprep.subr.bf16.mxu0 %v655
    %1384 = vmatpush1.bf16.msra.mxu0 %v654
    %1385 = vmatprep.subr.bf16.mxu0 %v659
    %1386 = vmatpush1.bf16.msra.mxu0 %v658
    %1387 = vmatprep.subr.bf16.mxu0 %v663
    %1388 = vmatpush1.bf16.msra.mxu0 %v662
    %1389 = vmatprep.subr.bf16.mxu0 0
    %1390 = vmatpush1.bf16.msra.mxu0 0
    %1391 = vmatprep.subr.bf16.mxu0 0
    %1392 = vmatpush1.bf16.msra.mxu0 0
    %1393 = vmatprep.subr.bf16.mxu0 0
    %1394 = vmatpush1.bf16.msra.mxu0 0
    %1395 = vmatprep.subr.bf16.mxu0 0
    %1396 = vmatpush1.bf16.msra.mxu0 0
    %1397 = vmatprep.subr.bf16.mxu0 0
    %1398 = vmatpush1.bf16.msra.mxu0 0
    %1399 = vmatprep.subr.bf16.mxu0 0
    %1400 = vmatpush1.bf16.msra.mxu0 0
    %1401 = vmatprep.subr.bf16.mxu0 0
    %1402 = vmatpush1.bf16.msra.mxu0 0
    %1403 = vmatprep.subr.bf16.mxu0 0
    %1404 = vmatpush1.bf16.msra.mxu0 0
    %1405 = vmatprep.mubr.bf16.mxu0 0
    %1406 = vmatmul.mubr.bf16.gmra.mrb[0].mxu0 %v1372
    %v1407 = vpop.f32.mrb[0].mxu0
    %v1408 = vadd.f32 0.0, %v1407
    %v1409 = vpop.f32.mrb[0].mxu0
    %v1410 = vadd.f32 0.0, %v1409
    %v1411 = vpop.f32.mrb[0].mxu0
    %v1412 = vpop.f32.mrb[0].mxu0
    %1413 = vdwg.mxu0
    %1414 = vmatprep.subr.bf16.mxu0 %v637
    %1415 = vmatpush1.bf16.msra.mxu0 %v636
    %1416 = vmatprep.subr.bf16.mxu0 %v641
    %1417 = vmatpush1.bf16.msra.mxu0 %v640
    %1418 = vmatprep.subr.bf16.mxu0 %v645
    %1419 = vmatpush1.bf16.msra.mxu0 %v644
    %1420 = vmatprep.subr.bf16.mxu0 %v649
    %1421 = vmatpush1.bf16.msra.mxu0 %v648
    %1422 = vmatprep.subr.bf16.mxu0 %v653
    %1423 = vmatpush1.bf16.msra.mxu0 %v652
    %1424 = vmatprep.subr.bf16.mxu0 %v657
    %1425 = vmatpush1.bf16.msra.mxu0 %v656
    %1426 = vmatprep.subr.bf16.mxu0 %v661
    %1427 = vmatpush1.bf16.msra.mxu0 %v660
    %1428 = vmatprep.subr.bf16.mxu0 %v665
    %1429 = vmatpush1.bf16.msra.mxu0 %v664
    %1430 = vmatprep.subr.bf16.mxu0 0
    %1431 = vmatpush1.bf16.msra.mxu0 0
    %1432 = vmatprep.subr.bf16.mxu0 0
    %1433 = vmatpush1.bf16.msra.mxu0 0
    %1434 = vmatprep.subr.bf16.mxu0 0
    %1435 = vmatpush1.bf16.msra.mxu0 0
    %1436 = vmatprep.subr.bf16.mxu0 0
    %1437 = vmatpush1.bf16.msra.mxu0 0
    %1438 = vmatprep.subr.bf16.mxu0 0
    %1439 = vmatpush1.bf16.msra.mxu0 0
    %1440 = vmatprep.subr.bf16.mxu0 0
    %1441 = vmatpush1.bf16.msra.mxu0 0
    %1442 = vmatprep.subr.bf16.mxu0 0
    %1443 = vmatpush1.bf16.msra.mxu0 0
    %1444 = vmatprep.subr.bf16.mxu0 0
    %1445 = vmatpush1.bf16.msra.mxu0 0
    %1446 = vmatprep.mubr.bf16.mxu0 0
    %1447 = vmatmul.mubr.bf16.gmra.mrb[0].mxu0 %v1372
    %v1448 = vpop.f32.mrb[0].mxu0
    %v1449 = vadd.f32 0.0, %v1448
    %v1450 = vpop.f32.mrb[0].mxu0
    %v1451 = vadd.f32 0.0, %v1450
    %v1452 = vpop.f32.mrb[0].mxu0
    %v1453 = vpop.f32.mrb[0].mxu0
    %1454 = vdwg.mxu0
    %v1459 = vcombine.low %v1408, %v1410
    %v1460 = vcombine.low %v1449, %v1451
    %v1462 = vunpack.c.l.s4 1966171168
    %v1463 = vunpack.c.0.s8 %v1462
    %v1464 = vlaneseq
    %v1465 = vshrl.u32 %v1464, 7
    %v1466 = vsub.s32 %v1463, %v1465
    %v1467 = vrot.slane %v1459, %v1466
    %v1469 = vunpack.c.l.s4 1966171168
    %v1470 = vunpack.c.0.s8 %v1469
    %v1471 = vlaneseq
    %v1472 = vshrl.u32 %v1471, 7
    %v1473 = vsub.s32 %v1470, %v1472
    %v1474 = vrot.slane %v1460, %v1473
    %v1475 = vcombine.low %v1467, %v1474
    %v1477 = vunpack.c.l.s4 1966171168
    %v1478 = vunpack.c.0.s8 %v1477
    %v1479 = vlaneseq
    %v1480 = vshrl.u32 %v1479, 7
    %v1481 = vsub.s32 %v1478, %v1480
    %v1482 = vrot.slane %v1475, %v1481
    %v1484 = vadd.f32 %v1371, %v1482
    %v1485 = vxor.u32 %v1484, 2147483648
    %v1486 = vmul.f32 %v1485, 1.442695
    %v1487 = vpow.pop %v1486
    %v1488 = vadd.f32 %v1487, 1.0
    %v1489 = vrcp.pop %v1488
    %v1490 = vmul.f32 1.0, %v1489
    %v1492 = vrot.slane %v1484, 3
    %v1494 = vtanh.pop %v1492
    %v1496 = vrot.slane %v1490, 1
    %v1498 = vmul.f32 %v1496, %v1365
    %v1499 = vmul.f32 %v1490, %v1494
    %v1500 = vadd.f32 %v1498, %v1499
    %v1501 = vtanh.pop %v1500
    %v1502 = vrot.slane %v1490, 2
    %v1504 = vmul.f32 %v1502, %v1501
    %s1505 = scalar_lea.vmem [#allocation2], 6
    %v1506 = vld [vmem:[%s1505] ss:$8 sm:$0xf]
    %v1507 = vpack.c.bf16 %v1504, %v1504
    %1508 = vmatprep.subr.bf16.mxu0 %v635
    %1509 = vmatpush1.bf16.msra.mxu0 %v634
    %1510 = vmatprep.subr.bf16.mxu0 %v639
    %1511 = vmatpush1.bf16.msra.mxu0 %v638
    %1512 = vmatprep.subr.bf16.mxu0 %v643
    %1513 = vmatpush1.bf16.msra.mxu0 %v642
    %1514 = vmatprep.subr.bf16.mxu0 %v647
    %1515 = vmatpush1.bf16.msra.mxu0 %v646
    %1516 = vmatprep.subr.bf16.mxu0 %v651
    %1517 = vmatpush1.bf16.msra.mxu0 %v650
    %1518 = vmatprep.subr.bf16.mxu0 %v655
    %1519 = vmatpush1.bf16.msra.mxu0 %v654
    %1520 = vmatprep.subr.bf16.mxu0 %v659
    %1521 = vmatpush1.bf16.msra.mxu0 %v658
    %1522 = vmatprep.subr.bf16.mxu0 %v663
    %1523 = vmatpush1.bf16.msra.mxu0 %v662
    %1524 = vmatprep.subr.bf16.mxu0 0
    %1525 = vmatpush1.bf16.msra.mxu0 0
    %1526 = vmatprep.subr.bf16.mxu0 0
    %1527 = vmatpush1.bf16.msra.mxu0 0
    %1528 = vmatprep.subr.bf16.mxu0 0
    %1529 = vmatpush1.bf16.msra.mxu0 0
    %1530 = vmatprep.subr.bf16.mxu0 0
    %1531 = vmatpush1.bf16.msra.mxu0 0
    %1532 = vmatprep.subr.bf16.mxu0 0
    %1533 = vmatpush1.bf16.msra.mxu0 0
    %1534 = vmatprep.subr.bf16.mxu0 0
    %1535 = vmatpush1.bf16.msra.mxu0 0
    %1536 = vmatprep.subr.bf16.mxu0 0
    %1537 = vmatpush1.bf16.msra.mxu0 0
    %1538 = vmatprep.subr.bf16.mxu0 0
    %1539 = vmatpush1.bf16.msra.mxu0 0
    %1540 = vmatprep.mubr.bf16.mxu0 0
    %1541 = vmatmul.mubr.bf16.gmra.mrb[0].mxu0 %v1507
    %v1542 = vpop.f32.mrb[0].mxu0
    %v1543 = vadd.f32 0.0, %v1542
    %v1544 = vpop.f32.mrb[0].mxu0
    %v1545 = vadd.f32 0.0, %v1544
    %v1546 = vpop.f32.mrb[0].mxu0
    %v1547 = vpop.f32.mrb[0].mxu0
    %1548 = vdwg.mxu0
    %1549 = vmatprep.subr.bf16.mxu0 %v637
    %1550 = vmatpush1.bf16.msra.mxu0 %v636
    %1551 = vmatprep.subr.bf16.mxu0 %v641
    %1552 = vmatpush1.bf16.msra.mxu0 %v640
    %1553 = vmatprep.subr.bf16.mxu0 %v645
    %1554 = vmatpush1.bf16.msra.mxu0 %v644
    %1555 = vmatprep.subr.bf16.mxu0 %v649
    %1556 = vmatpush1.bf16.msra.mxu0 %v648
    %1557 = vmatprep.subr.bf16.mxu0 %v653
    %1558 = vmatpush1.bf16.msra.mxu0 %v652
    %1559 = vmatprep.subr.bf16.mxu0 %v657
    %1560 = vmatpush1.bf16.msra.mxu0 %v656
    %1561 = vmatprep.subr.bf16.mxu0 %v661
    %1562 = vmatpush1.bf16.msra.mxu0 %v660
    %1563 = vmatprep.subr.bf16.mxu0 %v665
    %1564 = vmatpush1.bf16.msra.mxu0 %v664
    %1565 = vmatprep.subr.bf16.mxu0 0
    %1566 = vmatpush1.bf16.msra.mxu0 0
    %1567 = vmatprep.subr.bf16.mxu0 0
    %1568 = vmatpush1.bf16.msra.mxu0 0
    %1569 = vmatprep.subr.bf16.mxu0 0
    %1570 = vmatpush1.bf16.msra.mxu0 0
    %1571 = vmatprep.subr.bf16.mxu0 0
    %1572 = vmatpush1.bf16.msra.mxu0 0
    %1573 = vmatprep.subr.bf16.mxu0 0
    %1574 = vmatpush1.bf16.msra.mxu0 0
    %1575 = vmatprep.subr.bf16.mxu0 0
    %1576 = vmatpush1.bf16.msra.mxu0 0
    %1577 = vmatprep.subr.bf16.mxu0 0
    %1578 = vmatpush1.bf16.msra.mxu0 0
    %1579 = vmatprep.subr.bf16.mxu0 0
    %1580 = vmatpush1.bf16.msra.mxu0 0
    %1581 = vmatprep.mubr.bf16.mxu0 0
    %1582 = vmatmul.mubr.bf16.gmra.mrb[0].mxu0 %v1507
    %v1583 = vpop.f32.mrb[0].mxu0
    %v1584 = vadd.f32 0.0, %v1583
    %v1585 = vpop.f32.mrb[0].mxu0
    %v1586 = vadd.f32 0.0, %v1585
    %v1587 = vpop.f32.mrb[0].mxu0
    %v1588 = vpop.f32.mrb[0].mxu0
    %1589 = vdwg.mxu0
    %v1594 = vcombine.low %v1543, %v1545
    %v1595 = vcombine.low %v1584, %v1586
    %v1597 = vunpack.c.l.s4 1966171168
    %v1598 = vunpack.c.0.s8 %v1597
    %v1599 = vlaneseq
    %v1600 = vshrl.u32 %v1599, 7
    %v1601 = vsub.s32 %v1598, %v1600
    %v1602 = vrot.slane %v1594, %v1601
    %v1604 = vunpack.c.l.s4 1966171168
    %v1605 = vunpack.c.0.s8 %v1604
    %v1606 = vlaneseq
    %v1607 = vshrl.u32 %v1606, 7
    %v1608 = vsub.s32 %v1605, %v1607
    %v1609 = vrot.slane %v1595, %v1608
    %v1610 = vcombine.low %v1602, %v1609
    %v1612 = vunpack.c.l.s4 1966171168
    %v1613 = vunpack.c.0.s8 %v1612
    %v1614 = vlaneseq
    %v1615 = vshrl.u32 %v1614, 7
    %v1616 = vsub.s32 %v1613, %v1615
    %v1617 = vrot.slane %v1610, %v1616
    %v1619 = vadd.f32 %v1506, %v1617
    %v1620 = vxor.u32 %v1619, 2147483648
    %v1621 = vmul.f32 %v1620, 1.442695
    %v1622 = vpow.pop %v1621
    %v1623 = vadd.f32 %v1622, 1.0
    %v1624 = vrcp.pop %v1623
    %v1625 = vmul.f32 1.0, %v1624
    %v1627 = vrot.slane %v1619, 3
    %v1629 = vtanh.pop %v1627
    %v1631 = vrot.slane %v1625, 1
    %v1633 = vmul.f32 %v1631, %v1500
    %v1634 = vmul.f32 %v1625, %v1629
    %v1635 = vadd.f32 %v1633, %v1634
    %v1636 = vtanh.pop %v1635
    %v1637 = vrot.slane %v1625, 2
    %v1639 = vmul.f32 %v1637, %v1636
    %s1640 = scalar_lea.vmem [#allocation2], 7
    %v1641 = vld [vmem:[%s1640] ss:$8 sm:$0xf]
    %v1642 = vpack.c.bf16 %v1639, %v1639
    %1643 = vmatprep.subr.bf16.mxu0 %v635
    %1644 = vmatpush1.bf16.msra.mxu0 %v634
    %1645 = vmatprep.subr.bf16.mxu0 %v639
    %1646 = vmatpush1.bf16.msra.mxu0 %v638
    %1647 = vmatprep.subr.bf16.mxu0 %v643
    %1648 = vmatpush1.bf16.msra.mxu0 %v642
    %1649 = vmatprep.subr.bf16.mxu0 %v647
    %1650 = vmatpush1.bf16.msra.mxu0 %v646
    %1651 = vmatprep.subr.bf16.mxu0 %v651
    %1652 = vmatpush1.bf16.msra.mxu0 %v650
    %1653 = vmatprep.subr.bf16.mxu0 %v655
    %1654 = vmatpush1.bf16.msra.mxu0 %v654
    %1655 = vmatprep.subr.bf16.mxu0 %v659
    %1656 = vmatpush1.bf16.msra.mxu0 %v658
    %1657 = vmatprep.subr.bf16.mxu0 %v663
    %1658 = vmatpush1.bf16.msra.mxu0 %v662
    %1659 = vmatprep.subr.bf16.mxu0 0
    %1660 = vmatpush1.bf16.msra.mxu0 0
    %1661 = vmatprep.subr.bf16.mxu0 0
    %1662 = vmatpush1.bf16.msra.mxu0 0
    %1663 = vmatprep.subr.bf16.mxu0 0
    %1664 = vmatpush1.bf16.msra.mxu0 0
    %1665 = vmatprep.subr.bf16.mxu0 0
    %1666 = vmatpush1.bf16.msra.mxu0 0
    %1667 = vmatprep.subr.bf16.mxu0 0
    %1668 = vmatpush1.bf16.msra.mxu0 0
    %1669 = vmatprep.subr.bf16.mxu0 0
    %1670 = vmatpush1.bf16.msra.mxu0 0
    %1671 = vmatprep.subr.bf16.mxu0 0
    %1672 = vmatpush1.bf16.msra.mxu0 0
    %1673 = vmatprep.subr.bf16.mxu0 0
    %1674 = vmatpush1.bf16.msra.mxu0 0
    %1675 = vmatprep.mubr.bf16.mxu0 0
    %1676 = vmatmul.mubr.bf16.gmra.mrb[0].mxu0 %v1642
    %v1677 = vpop.f32.mrb[0].mxu0
    %v1678 = vadd.f32 0.0, %v1677
    %v1679 = vpop.f32.mrb[0].mxu0
    %v1680 = vadd.f32 0.0, %v1679
    %v1681 = vpop.f32.mrb[0].mxu0
    %v1682 = vpop.f32.mrb[0].mxu0
    %1683 = vdwg.mxu0
    %1684 = vmatprep.subr.bf16.mxu0 %v637
    %1685 = vmatpush1.bf16.msra.mxu0 %v636
    %1686 = vmatprep.subr.bf16.mxu0 %v641
    %1687 = vmatpush1.bf16.msra.mxu0 %v640
    %1688 = vmatprep.subr.bf16.mxu0 %v645
    %1689 = vmatpush1.bf16.msra.mxu0 %v644
    %1690 = vmatprep.subr.bf16.mxu0 %v649
    %1691 = vmatpush1.bf16.msra.mxu0 %v648
    %1692 = vmatprep.subr.bf16.mxu0 %v653
    %1693 = vmatpush1.bf16.msra.mxu0 %v652
    %1694 = vmatprep.subr.bf16.mxu0 %v657
    %1695 = vmatpush1.bf16.msra.mxu0 %v656
    %1696 = vmatprep.subr.bf16.mxu0 %v661
    %1697 = vmatpush1.bf16.msra.mxu0 %v660
    %1698 = vmatprep.subr.bf16.mxu0 %v665
    %1699 = vmatpush1.bf16.msra.mxu0 %v664
    %1700 = vmatprep.subr.bf16.mxu0 0
    %1701 = vmatpush1.bf16.msra.mxu0 0
    %1702 = vmatprep.subr.bf16.mxu0 0
    %1703 = vmatpush1.bf16.msra.mxu0 0
    %1704 = vmatprep.subr.bf16.mxu0 0
    %1705 = vmatpush1.bf16.msra.mxu0 0
    %1706 = vmatprep.subr.bf16.mxu0 0
    %1707 = vmatpush1.bf16.msra.mxu0 0
    %1708 = vmatprep.subr.bf16.mxu0 0
    %1709 = vmatpush1.bf16.msra.mxu0 0
    %1710 = vmatprep.subr.bf16.mxu0 0
    %1711 = vmatpush1.bf16.msra.mxu0 0
    %1712 = vmatprep.subr.bf16.mxu0 0
    %1713 = vmatpush1.bf16.msra.mxu0 0
    %1714 = vmatprep.subr.bf16.mxu0 0
    %1715 = vmatpush1.bf16.msra.mxu0 0
    %1716 = vmatprep.mubr.bf16.mxu0 0
    %1717 = vmatmul.mubr.bf16.gmra.mrb[0].mxu0 %v1642
    %v1718 = vpop.f32.mrb[0].mxu0
    %v1719 = vadd.f32 0.0, %v1718
    %v1720 = vpop.f32.mrb[0].mxu0
    %v1721 = vadd.f32 0.0, %v1720
    %v1722 = vpop.f32.mrb[0].mxu0
    %v1723 = vpop.f32.mrb[0].mxu0
    %1724 = vdwg.mxu0
    %v1729 = vcombine.low %v1678, %v1680
    %v1730 = vcombine.low %v1719, %v1721
    %v1732 = vunpack.c.l.s4 1966171168
    %v1733 = vunpack.c.0.s8 %v1732
    %v1734 = vlaneseq
    %v1735 = vshrl.u32 %v1734, 7
    %v1736 = vsub.s32 %v1733, %v1735
    %v1737 = vrot.slane %v1729, %v1736
    %v1739 = vunpack.c.l.s4 1966171168
    %v1740 = vunpack.c.0.s8 %v1739
    %v1741 = vlaneseq
    %v1742 = vshrl.u32 %v1741, 7
    %v1743 = vsub.s32 %v1740, %v1742
    %v1744 = vrot.slane %v1730, %v1743
    %v1745 = vcombine.low %v1737, %v1744
    %v1747 = vunpack.c.l.s4 1966171168
    %v1748 = vunpack.c.0.s8 %v1747
    %v1749 = vlaneseq
    %v1750 = vshrl.u32 %v1749, 7
    %v1751 = vsub.s32 %v1748, %v1750
    %v1752 = vrot.slane %v1745, %v1751
    %v1754 = vadd.f32 %v1641, %v1752
    %v1755 = vxor.u32 %v1754, 2147483648
    %v1756 = vmul.f32 %v1755, 1.442695
    %v1757 = vpow.pop %v1756
    %v1758 = vadd.f32 %v1757, 1.0
    %v1759 = vrcp.pop %v1758
    %v1760 = vmul.f32 1.0, %v1759
    %v1762 = vrot.slane %v1754, 3
    %v1764 = vtanh.pop %v1762
    %v1766 = vrot.slane %v1760, 1
    %v1768 = vmul.f32 %v1766, %v1635
    %v1769 = vmul.f32 %v1760, %v1764
    %v1770 = vadd.f32 %v1768, %v1769
    %v1771 = vtanh.pop %v1770
    %v1772 = vrot.slane %v1760, 2
    %v1774 = vmul.f32 %v1772, %v1771
    %v1775 = vld [vmem:[%s8] sm:$0xff]
    %v1776 = vld [vmem:[%s8 + $0x8] sm:$0xff]
    %v1777 = vld [vmem:[%s8 + $0x10] sm:$0xff]
    %v1778 = vld [vmem:[%s8 + $0x18] sm:$0xff]
    %v1779 = vld [vmem:[%s8 + $0x20] sm:$0xff]
    %v1780 = vld [vmem:[%s8 + $0x28] sm:$0xff]
    %v1781 = vld [vmem:[%s8 + $0x30] sm:$0xff]
    %v1782 = vld [vmem:[%s8 + $0x38] sm:$0xff]
    %v1783 = vld [vmem:[%s8 + $0x40] sm:$0xff]
    %v1784 = vld [vmem:[%s8 + $0x48] sm:$0xff]
    %v1785 = vld [vmem:[%s8 + $0x50] sm:$0xff]
    %v1786 = vld [vmem:[%s8 + $0x58] sm:$0xff]
    %v1787 = vld [vmem:[%s8 + $0x60] sm:$0xff]
    %v1788 = vld [vmem:[%s8 + $0x68] sm:$0xff]
    %v1789 = vld [vmem:[%s8 + $0x70] sm:$0xff]
    %v1790 = vld [vmem:[%s8 + $0x78] sm:$0xff]
    %v1791 = vld [vmem:[%s9] sm:$0x1]
    %1792 = vmatprep.subr.mxu0 0.0
    %1793 = vmatpush1.msra.mxu0 %v1775
    %1794 = vmatprep.subr.mxu0 0.0
    %1795 = vmatpush1.msra.mxu0 %v1776
    %1796 = vmatprep.subr.mxu0 0.0
    %1797 = vmatpush1.msra.mxu0 %v1777
    %1798 = vmatprep.subr.mxu0 0.0
    %1799 = vmatpush1.msra.mxu0 %v1778
    %1800 = vmatprep.subr.mxu0 0.0
    %1801 = vmatpush1.msra.mxu0 %v1779
    %1802 = vmatprep.subr.mxu0 0.0
    %1803 = vmatpush1.msra.mxu0 %v1780
    %1804 = vmatprep.subr.mxu0 0.0
    %1805 = vmatpush1.msra.mxu0 %v1781
    %1806 = vmatprep.subr.mxu0 0.0
    %1807 = vmatpush1.msra.mxu0 %v1782
    %1808 = vmatprep.subr.mxu0 0.0
    %1809 = vmatpush1.msra.mxu0 %v1783
    %1810 = vmatprep.subr.mxu0 0.0
    %1811 = vmatpush1.msra.mxu0 %v1784
    %1812 = vmatprep.subr.mxu0 0.0
    %1813 = vmatpush1.msra.mxu0 %v1785
    %1814 = vmatprep.subr.mxu0 0.0
    %1815 = vmatpush1.msra.mxu0 %v1786
    %1816 = vmatprep.subr.mxu0 0.0
    %1817 = vmatpush1.msra.mxu0 %v1787
    %1818 = vmatprep.subr.mxu0 0.0
    %1819 = vmatpush1.msra.mxu0 %v1788
    %1820 = vmatprep.subr.mxu0 0.0
    %1821 = vmatpush1.msra.mxu0 %v1789
    %1822 = vmatprep.subr.mxu0 0.0
    %1823 = vmatpush1.msra.mxu0 %v1790
    %1824 = vmatprep.subr.mxu0 0.0
    %1825 = vmatpush1.msra.mxu0 0.0
    %1826 = vmatprep.subr.mxu0 0.0
    %1827 = vmatpush1.msra.mxu0 0.0
    %1828 = vmatprep.subr.mxu0 0.0
    %1829 = vmatpush1.msra.mxu0 0.0
    %1830 = vmatprep.subr.mxu0 0.0
    %1831 = vmatpush1.msra.mxu0 0.0
    %1832 = vmatprep.subr.mxu0 0.0
    %1833 = vmatpush1.msra.mxu0 0.0
    %1834 = vmatprep.subr.mxu0 0.0
    %1835 = vmatpush1.msra.mxu0 0.0
    %1836 = vmatprep.subr.mxu0 0.0
    %1837 = vmatpush1.msra.mxu0 0.0
    %1838 = vmatprep.subr.mxu0 0.0
    %1839 = vmatpush1.msra.mxu0 0.0
    %1840 = vmatprep.subr.mxu0 0.0
    %1841 = vmatpush1.msra.mxu0 0.0
    %1842 = vmatprep.subr.mxu0 0.0
    %1843 = vmatpush1.msra.mxu0 0.0
    %1844 = vmatprep.subr.mxu0 0.0
    %1845 = vmatpush1.msra.mxu0 0.0
    %1846 = vmatprep.subr.mxu0 0.0
    %1847 = vmatpush1.msra.mxu0 0.0
    %1848 = vmatprep.subr.mxu0 0.0
    %1849 = vmatpush1.msra.mxu0 0.0
    %1850 = vmatprep.subr.mxu0 0.0
    %1851 = vmatpush1.msra.mxu0 0.0
    %1852 = vmatprep.subr.mxu0 0.0
    %1853 = vmatpush1.msra.mxu0 0.0
    %1854 = vmatprep.subr.mxu0 0.0
    %1855 = vmatpush1.msra.mxu0 0.0
    %1856 = vmatprep.mubr.f32.mxu0 0.0
    %1857 = vmatmul.mubr.f32.gmra.mrb[0].mxu0 %v1774
    %v1858 = vpop.f32.mrb[0].mxu0
    %v1859 = vadd.f32 %v1791, %v1858
    %v1860 = vpop.f32.mrb[0].mxu0
    %1861 = vdwg.mxu0
    %vm1862 = vcmask 122880
    %1863 = vst.msk [vmem:[#allocation8] sm:$0x1] %vm1862, %v1859
    // Predicated region
    $region50: #{septurn_rnn_forward.1} parent=1 // pred_check
      _
    $region51: #{septurn_rnn_forward.1} parent=1 // pred_check_branch
      %1865 = sbr.rel (0) target = $region53
    $region52: #{septurn_rnn_forward.1} parent=1 // pred_region
      %s1867 = ssub.s32 16, 16
      %1868 = vsyncadd [#allocation5], %s1867
      %s1870 = sshll.u32 [#allocation8], 4
      %s1871 = int_to_ptr.vmem [resolvable:$true] %s1870
      %1873 = dma.vmem_to_hbm [thread:$0]  %s1871, 16, %s10, [#allocation5]
    $region53: #{septurn_rnn_forward.1} parent=1 // pred_fallthru
      _
    // Predicated region
    $region54: #{septurn_rnn_forward.1} parent=1 // pred_check
      _
    $region55: #{septurn_rnn_forward.1} parent=1 // pred_check_branch
      %1875 = sbr.rel (0) target = $region57
    $region56: #{septurn_rnn_forward.1} parent=1 // pred_region
      %1876 = dma.done [#allocation5], 16
    $region57: #{septurn_rnn_forward.1} parent=1 // pred_fallthru
      _
    %1877 = vsyncpa [#allocation4], 1
    %1878 = vsyncpa [#allocation7], 1
    %1879 = vsyncpa [#allocation5], 1

</llo_original>
